<compile_context>
chip_gen: v6e
topology: v6e:2x2x1
jax: 0.10.0
libtpu: 0.0.40
codegen_flags: <defaults>
</compile_context>

<pallas_src>
from functools import partial

import numpy as np

import jax
import jax.numpy as jnp
from jax.experimental import pallas as pl
from jax.experimental.pallas import tpu as pltpu

BN_EPS = 1e-5


def _make_res_block_kernel(N, H, W, C, matmul_dtype):
    NH, WC = N * H, W * C
    inv_n = 1.0 / float(N * H * W)          # BN sample count per channel

    def kernel(x_ref, wb1_ref, wb2_ref, g1_ref, be1_ref, g2_ref, be2_ref,
               fold_ref, unfold_ref, mtop_ref, mbot_ref, out_ref):
        """Whole res_block forward, lane-dense flat layout.

        x_ref      : (N*H, W*C) f32, row = (n, h), lane = w*C + c
        wb1/wb2_ref: (3, W*C, W*C) banded conv weights (width padding folded in)
        g*/be*     : (1, C)  BN gamma / beta (f32)
        fold_ref   : (W*C, C) per-channel fold matrix (sum over width)
        unfold_ref : (C, W*C) per-channel broadcast matrix
        mtop/mbot  : (N*H, 1) 0/1 masks: does row h-1 / h+1 exist in-sample
        out_ref    : (N*H, W*C) f32
        """
        x = x_ref[...]                                   # (NH, WC) f32
        fold = fold_ref[...]                             # (WC, C)
        unfold = unfold_ref[...]                         # (C, WC)
        m_top = mtop_ref[...]                            # (NH, 1)
        m_bot = mbot_ref[...]                            # (NH, 1)

        def conv3x3(src, wb_ref):
            # src: (NH, WC) in matmul_dtype.  One matmul per row tap; the row
            # shift is a roll of the *output* (XLU) + a cross-sample mask.
            y0 = jnp.dot(src, wb_ref[0], preferred_element_type=jnp.float32)
            y1 = jnp.dot(src, wb_ref[1], preferred_element_type=jnp.float32)
            y2 = jnp.dot(src, wb_ref[2], preferred_element_type=jnp.float32)
            return (y1
                    + m_top * pltpu.roll(y0, 1, axis=0)          # tap at h-1
                    + m_bot * pltpu.roll(y2, NH - 1, axis=0))    # tap at h+1

        def bn_relu(acc, gamma, beta):
            # Training-mode BatchNorm2d fused into one per-channel affine.
            # Stats / affine / ReLU all kept in f32 (review correctness note).
            s = jnp.sum(acc, axis=0, keepdims=True)              # (1, WC)
            ss = jnp.sum(acc * acc, axis=0, keepdims=True)       # (1, WC)
            mean = jnp.dot(s, fold, preferred_element_type=jnp.float32) * inv_n
            ex2 = jnp.dot(ss, fold, preferred_element_type=jnp.float32) * inv_n
            var = ex2 - mean * mean
            a = gamma * jax.lax.rsqrt(var + BN_EPS)              # (1, C)
            b = beta - mean * a                                  # (1, C)
            a_wc = jnp.dot(a, unfold, preferred_element_type=jnp.float32)
            b_wc = jnp.dot(b, unfold, preferred_element_type=jnp.float32)
            return jnp.maximum(acc * a_wc + b_wc, 0.0)

        h1 = bn_relu(conv3x3(x.astype(matmul_dtype), wb1_ref),
                     g1_ref[...], be1_ref[...])                  # (NH, WC) f32
        h2 = bn_relu(conv3x3(h1.astype(matmul_dtype), wb2_ref),
                     g2_ref[...], be2_ref[...])                  # (NH, WC) f32

        out_ref[...] = h2 + x           # residual: lane-aligned, exact f32

    return kernel


@partial(jax.jit, static_argnames=("matmul_dtype",))
def res_block_forward(x_nchw, params, matmul_dtype=jnp.bfloat16):
    """x_nchw: (N, C, H, W) float32; params as produced by init_params."""
    # Conv biases (b1, b2) are intentionally not passed to the kernel: a conv
    # bias immediately followed by training-mode BatchNorm is a no-op.
    w1, _b1, g1, be1, w2, _b2, g2, be2 = params
    N, C, H, W = x_nchw.shape
    NH, WC = N * H, W * C

    # Lane-dense activation layout: row = (n, h), lane = w*C + c (NHWC flat).
    x_flat = jnp.transpose(x_nchw, (0, 2, 3, 1)).reshape(NH, WC).astype(jnp.float32)

    # Banded ("Toeplitz over width") conv weights, width zero-padding folded in:
    # sel[wi, wo, dx] = 1 iff wi == wo + dx - 1 and 0 <= wi < W.
    sel = np.zeros((W, W, 3), np.float32)
    for wo in range(W):
        for dx in range(3):
            wi = wo + dx - 1
            if 0 <= wi < W:
                sel[wi, wo, dx] = 1.0

    def band(w):
        # w: (Cout, Cin, 3, 3) OIHW -> (3, W*Cin, W*Cout), one band per row tap.
        cout, cin = w.shape[0], w.shape[1]
        b = jnp.einsum('oiyx,pqx->ypiqo', w, sel)
        return b.reshape(3, W * cin, W * cout).astype(matmul_dtype)

    wb1, wb2 = band(w1), band(w2)

    # Per-channel fold / broadcast matrices and the cross-sample row-tap masks
    # (all tiny constants, built at trace time).
    fold_np = np.tile(np.eye(C, dtype=np.float32), (W, 1))        # (W*C, C)
    unfold_np = fold_np.T.copy()                                  # (C, W*C)
    hh = np.arange(NH) % H
    m_top = (hh != 0).astype(np.float32).reshape(NH, 1)
    m_bot = (hh != H - 1).astype(np.float32).reshape(NH, 1)

    args = (x_flat, wb1, wb2,
            g1.reshape(1, C), be1.reshape(1, C),
            g2.reshape(1, C), be2.reshape(1, C),
            jnp.asarray(fold_np), jnp.asarray(unfold_np),
            jnp.asarray(m_top), jnp.asarray(m_bot))

    # FLOPs of the dense banded matmuls actually executed (3 taps x 2 convs).
    flops = 2 * (2 * 3 * NH * WC * WC)
    operand_bytes = sum(int(np.prod(a.shape)) * a.dtype.itemsize for a in args)
    out_bytes = NH * WC * 4
    bytes_accessed = operand_bytes + out_bytes
    # VMEM budget from the real buffers (+4x headroom for in-kernel temporaries),
    # capped at v7x's 64 MiB physical VMEM.
    vmem_limit = int(min(max(4 * (operand_bytes + out_bytes), 4 << 20), 64 << 20))

    vmem_spec = pl.BlockSpec(memory_space=pltpu.MemorySpace.VMEM)
    out = pl.pallas_call(
        _make_res_block_kernel(N, H, W, C, matmul_dtype),
        out_shape=jax.ShapeDtypeStruct((NH, WC), jnp.float32),
        in_specs=[vmem_spec] * len(args),
        out_specs=vmem_spec,
        compiler_params=pltpu.CompilerParams(vmem_limit_bytes=vmem_limit),
        cost_estimate=pl.CostEstimate(flops=flops, transcendentals=2 * C,
                                      bytes_accessed=bytes_accessed),
    )(*args)

    out = out.reshape(N, H, W, C)
    return jnp.transpose(out, (0, 3, 1, 2))                # back to NCHW


def init_params(key, c):
    """Deterministic synthetic parameters (res_block requires in_size == out_size)."""
    ks = jax.random.split(key, 6)
    w1 = 0.1 * jax.random.normal(ks[0], (c, c, 3, 3), jnp.float32)      # OIHW
    b1 = 0.1 * jax.random.normal(ks[1], (c,), jnp.float32)
    g1 = jnp.ones((c,), jnp.float32) + 0.05 * jax.random.normal(ks[2], (c,), jnp.float32)
    be1 = 0.05 * jax.random.normal(ks[3], (c,), jnp.float32)
    w2 = 0.1 * jax.random.normal(ks[4], (c, c, 3, 3), jnp.float32)
    b2 = 0.1 * jax.random.normal(ks[5], (c,), jnp.float32)
    g2 = jnp.ones((c,), jnp.float32)
    be2 = jnp.zeros((c,), jnp.float32)
    return (w1, b1, g1, be1, w2, b2, g2, be2)


def ref_res_block(x, params, conv_dtype=jnp.float32):
    """Pure-JAX reference matching the PyTorch training-mode forward.

    conv_dtype=jnp.bfloat16 mirrors the kernel's MXU operand precision
    (f32 accumulation and f32 BatchNorm either way)."""
    w1, b1, g1, be1, w2, b2, g2, be2 = params

    def conv_bn_relu(h, w, b, g, be):
        y = jax.lax.conv_general_dilated(
            h.astype(conv_dtype), w.astype(conv_dtype),
            window_strides=(1, 1), padding=((1, 1), (1, 1)),
            dimension_numbers=('NCHW', 'OIHW', 'NCHW'),
            preferred_element_type=jnp.float32) + b[None, :, None, None]
        mean = y.mean(axis=(0, 2, 3), keepdims=True)
        var = ((y - mean) ** 2).mean(axis=(0, 2, 3), keepdims=True)
        yhat = (y - mean) / jnp.sqrt(var + BN_EPS)
        return jnp.maximum(yhat * g[None, :, None, None] + be[None, :, None, None], 0.0)

    h = conv_bn_relu(x, w1, b1, g1, be1)
    h = conv_bn_relu(h, w2, b2, g2, be2)
    return h + x


if __name__ == "__main__":
    key = jax.random.PRNGKey(0)
    kx, kp = jax.random.split(key)

    N, C, H, W = 2, 8, 16, 16          # W*C = 128 -> fully lane-dense layout
    x = jax.random.normal(kx, (N, C, H, W), jnp.float32)
    params = init_params(kp, C)

    out = jax.block_until_ready(res_block_forward(x, params))              # bf16 MXU path
    out_f32 = jax.block_until_ready(res_block_forward(x, params, matmul_dtype=jnp.float32))

    ref = jax.block_until_ready(ref_res_block(x, params))
    ref_bf = jax.block_until_ready(ref_res_block(x, params, conv_dtype=jnp.bfloat16))

    assert out.shape == (N, C, H, W)
    err_exact = float(jnp.max(jnp.abs(out_f32 - ref)))      # structural check, full f32
    err_match = float(jnp.max(jnp.abs(out - ref_bf)))       # bf16 path vs matched-precision ref
    err_drift = float(jnp.max(jnp.abs(out - ref)))          # bf16 conv-operand drift vs f32 ref
    assert err_exact < 2e-4, f"f32-matmul path vs f32 reference: max err {err_exact}"
    assert err_match < 5e-3, f"bf16-matmul path vs matched reference: max err {err_match}"
    assert err_drift < 8e-2, f"bf16-matmul path vs f32 reference: max err {err_drift}"

    print("KERNEL_OK")
</pallas_src>

<mosaic_0001>
module attributes {stable_mosaic.version = 11 : i64} {
  func.func @kernel(%arg0: memref<32x128xf32, #tpu.memory_space<vmem>>, %arg1: memref<3x128x128xbf16, #tpu.memory_space<vmem>>, %arg2: memref<3x128x128xbf16, #tpu.memory_space<vmem>>, %arg3: memref<1x8xf32, #tpu.memory_space<vmem>>, %arg4: memref<1x8xf32, #tpu.memory_space<vmem>>, %arg5: memref<1x8xf32, #tpu.memory_space<vmem>>, %arg6: memref<1x8xf32, #tpu.memory_space<vmem>>, %arg7: memref<128x8xf32, #tpu.memory_space<vmem>>, %arg8: memref<8x128xf32, #tpu.memory_space<vmem>>, %arg9: memref<32x1xf32, #tpu.memory_space<vmem>>, %arg10: memref<32x1xf32, #tpu.memory_space<vmem>>, %arg11: memref<32x128xf32, #tpu.memory_space<vmem>>) attributes {dimension_semantics = [], scalar_prefetch = 0 : i64, scratch_operands = 0 : i64, tpu.core_type = #tpu.core_type<tc>} {
    %c0 = arith.constant 0 : index
    %c0_0 = arith.constant 0 : index
    %0 = vector.load %arg0[%c0, %c0_0] : memref<32x128xf32, #tpu.memory_space<vmem>>, vector<32x128xf32>
    %c0_1 = arith.constant 0 : index
    %c0_2 = arith.constant 0 : index
    %1 = vector.load %arg7[%c0_1, %c0_2] : memref<128x8xf32, #tpu.memory_space<vmem>>, vector<128x8xf32>
    %c0_3 = arith.constant 0 : index
    %c0_4 = arith.constant 0 : index
    %2 = vector.load %arg8[%c0_3, %c0_4] : memref<8x128xf32, #tpu.memory_space<vmem>>, vector<8x128xf32>
    %c0_5 = arith.constant 0 : index
    %c0_6 = arith.constant 0 : index
    %3 = vector.load %arg9[%c0_5, %c0_6] : memref<32x1xf32, #tpu.memory_space<vmem>>, vector<32x1xf32>
    %c0_7 = arith.constant 0 : index
    %c0_8 = arith.constant 0 : index
    %4 = vector.load %arg10[%c0_7, %c0_8] : memref<32x1xf32, #tpu.memory_space<vmem>>, vector<32x1xf32>
    %5 = arith.truncf %0 : vector<32x128xf32> to vector<32x128xbf16>
    %c0_9 = arith.constant 0 : index
    %c0_10 = arith.constant 0 : index
    %c0_11 = arith.constant 0 : index
    %6 = vector.load %arg1[%c0_9, %c0_10, %c0_11] : memref<3x128x128xbf16, #tpu.memory_space<vmem>>, vector<1x128x128xbf16>
    %7 = vector.shape_cast %6 : vector<1x128x128xbf16> to vector<128x128xbf16>
    %cst = arith.constant dense<0.000000e+00> : vector<32x128xf32>
    %8 = tpu.matmul %5, %7, %cst {dimension_numbers = #tpu.dot_dimension_numbers<[1], [0], [0], [1], [0, 0, 1, 1], [], []>} : vector<32x128xbf16>, vector<128x128xbf16>, vector<32x128xf32> -> vector<32x128xf32>
    %c1 = arith.constant 1 : index
    %c0_12 = arith.constant 0 : index
    %c0_13 = arith.constant 0 : index
    %9 = vector.load %arg1[%c1, %c0_12, %c0_13] : memref<3x128x128xbf16, #tpu.memory_space<vmem>>, vector<1x128x128xbf16>
    %10 = vector.shape_cast %9 : vector<1x128x128xbf16> to vector<128x128xbf16>
    %cst_14 = arith.constant dense<0.000000e+00> : vector<32x128xf32>
    %11 = tpu.matmul %5, %10, %cst_14 {dimension_numbers = #tpu.dot_dimension_numbers<[1], [0], [0], [1], [0, 0, 1, 1], [], []>} : vector<32x128xbf16>, vector<128x128xbf16>, vector<32x128xf32> -> vector<32x128xf32>
    %c2 = arith.constant 2 : index
    %c0_15 = arith.constant 0 : index
    %c0_16 = arith.constant 0 : index
    %12 = vector.load %arg1[%c2, %c0_15, %c0_16] : memref<3x128x128xbf16, #tpu.memory_space<vmem>>, vector<1x128x128xbf16>
    %13 = vector.shape_cast %12 : vector<1x128x128xbf16> to vector<128x128xbf16>
    %cst_17 = arith.constant dense<0.000000e+00> : vector<32x128xf32>
    %14 = tpu.matmul %5, %13, %cst_17 {dimension_numbers = #tpu.dot_dimension_numbers<[1], [0], [0], [1], [0, 0, 1, 1], [], []>} : vector<32x128xbf16>, vector<128x128xbf16>, vector<32x128xf32> -> vector<32x128xf32>
    %c1_i32 = arith.constant 1 : i32
    %15 = tpu.dynamic_rotate %8 by %c1_i32 dim 0 : vector<32x128xf32>, i32 -> vector<32x128xf32>
    %16 = vector.broadcast %3 : vector<32x1xf32> to vector<32x128xf32>
    %17 = arith.mulf %16, %15 : vector<32x128xf32>
    %18 = arith.addf %11, %17 : vector<32x128xf32>
    %c31_i32 = arith.constant 31 : i32
    %19 = tpu.dynamic_rotate %14 by %c31_i32 dim 0 : vector<32x128xf32>, i32 -> vector<32x128xf32>
    %20 = vector.broadcast %4 : vector<32x1xf32> to vector<32x128xf32>
    %21 = arith.mulf %20, %19 : vector<32x128xf32>
    %22 = arith.addf %18, %21 : vector<32x128xf32>
    %c0_18 = arith.constant 0 : index
    %c0_19 = arith.constant 0 : index
    %23 = vector.load %arg3[%c0_18, %c0_19] : memref<1x8xf32, #tpu.memory_space<vmem>>, vector<1x8xf32>
    %c0_20 = arith.constant 0 : index
    %c0_21 = arith.constant 0 : index
    %24 = vector.load %arg4[%c0_20, %c0_21] : memref<1x8xf32, #tpu.memory_space<vmem>>, vector<1x8xf32>
    %cst_22 = arith.constant dense<0.000000e+00> : vector<128xf32>
    %25 = vector.multi_reduction <add>, %22, %cst_22 [0] : vector<32x128xf32> to vector<128xf32>
    %26 = vector.shape_cast %25 : vector<128xf32> to vector<1x128xf32>
    %27 = arith.mulf %22, %22 : vector<32x128xf32>
    %cst_23 = arith.constant dense<0.000000e+00> : vector<128xf32>
    %28 = vector.multi_reduction <add>, %27, %cst_23 [0] : vector<32x128xf32> to vector<128xf32>
    %29 = vector.shape_cast %28 : vector<128xf32> to vector<1x128xf32>
    %cst_24 = arith.constant dense<0.000000e+00> : vector<1x8xf32>
    %30 = tpu.matmul %26, %1, %cst_24 {dimension_numbers = #tpu.dot_dimension_numbers<[1], [0], [0], [1], [0, 0, 1, 1], [], []>} : vector<1x128xf32>, vector<128x8xf32>, vector<1x8xf32> -> vector<1x8xf32>
    %cst_25 = arith.constant 0.001953125 : f32
    %31 = vector.broadcast %cst_25 : f32 to vector<1x8xf32>
    %32 = arith.mulf %30, %31 : vector<1x8xf32>
    %cst_26 = arith.constant dense<0.000000e+00> : vector<1x8xf32>
    %33 = tpu.matmul %29, %1, %cst_26 {dimension_numbers = #tpu.dot_dimension_numbers<[1], [0], [0], [1], [0, 0, 1, 1], [], []>} : vector<1x128xf32>, vector<128x8xf32>, vector<1x8xf32> -> vector<1x8xf32>
    %cst_27 = arith.constant 0.001953125 : f32
    %34 = vector.broadcast %cst_27 : f32 to vector<1x8xf32>
    %35 = arith.mulf %33, %34 : vector<1x8xf32>
    %36 = arith.mulf %32, %32 : vector<1x8xf32>
    %37 = arith.subf %35, %36 : vector<1x8xf32>
    %cst_28 = arith.constant 9.99999974E-6 : f32
    %38 = vector.broadcast %cst_28 : f32 to vector<1x8xf32>
    %39 = arith.addf %37, %38 : vector<1x8xf32>
    %40 = math.rsqrt %39 : vector<1x8xf32>
    %41 = arith.mulf %23, %40 : vector<1x8xf32>
    %42 = arith.mulf %32, %41 : vector<1x8xf32>
    %43 = arith.subf %24, %42 : vector<1x8xf32>
    %cst_29 = arith.constant dense<0.000000e+00> : vector<1x128xf32>
    %44 = tpu.matmul %41, %2, %cst_29 {dimension_numbers = #tpu.dot_dimension_numbers<[1], [0], [0], [1], [0, 0, 1, 1], [], []>} : vector<1x8xf32>, vector<8x128xf32>, vector<1x128xf32> -> vector<1x128xf32>
    %cst_30 = arith.constant dense<0.000000e+00> : vector<1x128xf32>
    %45 = tpu.matmul %43, %2, %cst_30 {dimension_numbers = #tpu.dot_dimension_numbers<[1], [0], [0], [1], [0, 0, 1, 1], [], []>} : vector<1x8xf32>, vector<8x128xf32>, vector<1x128xf32> -> vector<1x128xf32>
    %46 = vector.broadcast %44 : vector<1x128xf32> to vector<32x128xf32>
    %47 = arith.mulf %22, %46 : vector<32x128xf32>
    %48 = vector.broadcast %45 : vector<1x128xf32> to vector<32x128xf32>
    %49 = arith.addf %47, %48 : vector<32x128xf32>
    %cst_31 = arith.constant 0.000000e+00 : f32
    %50 = vector.broadcast %cst_31 : f32 to vector<32x128xf32>
    %51 = arith.maximumf %49, %50 : vector<32x128xf32>
    %52 = arith.truncf %51 : vector<32x128xf32> to vector<32x128xbf16>
    %c0_32 = arith.constant 0 : index
    %c0_33 = arith.constant 0 : index
    %c0_34 = arith.constant 0 : index
    %53 = vector.load %arg2[%c0_32, %c0_33, %c0_34] : memref<3x128x128xbf16, #tpu.memory_space<vmem>>, vector<1x128x128xbf16>
    %54 = vector.shape_cast %53 : vector<1x128x128xbf16> to vector<128x128xbf16>
    %cst_35 = arith.constant dense<0.000000e+00> : vector<32x128xf32>
    %55 = tpu.matmul %52, %54, %cst_35 {dimension_numbers = #tpu.dot_dimension_numbers<[1], [0], [0], [1], [0, 0, 1, 1], [], []>} : vector<32x128xbf16>, vector<128x128xbf16>, vector<32x128xf32> -> vector<32x128xf32>
    %c1_36 = arith.constant 1 : index
    %c0_37 = arith.constant 0 : index
    %c0_38 = arith.constant 0 : index
    %56 = vector.load %arg2[%c1_36, %c0_37, %c0_38] : memref<3x128x128xbf16, #tpu.memory_space<vmem>>, vector<1x128x128xbf16>
    %57 = vector.shape_cast %56 : vector<1x128x128xbf16> to vector<128x128xbf16>
    %cst_39 = arith.constant dense<0.000000e+00> : vector<32x128xf32>
    %58 = tpu.matmul %52, %57, %cst_39 {dimension_numbers = #tpu.dot_dimension_numbers<[1], [0], [0], [1], [0, 0, 1, 1], [], []>} : vector<32x128xbf16>, vector<128x128xbf16>, vector<32x128xf32> -> vector<32x128xf32>
    %c2_40 = arith.constant 2 : index
    %c0_41 = arith.constant 0 : index
    %c0_42 = arith.constant 0 : index
    %59 = vector.load %arg2[%c2_40, %c0_41, %c0_42] : memref<3x128x128xbf16, #tpu.memory_space<vmem>>, vector<1x128x128xbf16>
    %60 = vector.shape_cast %59 : vector<1x128x128xbf16> to vector<128x128xbf16>
    %cst_43 = arith.constant dense<0.000000e+00> : vector<32x128xf32>
    %61 = tpu.matmul %52, %60, %cst_43 {dimension_numbers = #tpu.dot_dimension_numbers<[1], [0], [0], [1], [0, 0, 1, 1], [], []>} : vector<32x128xbf16>, vector<128x128xbf16>, vector<32x128xf32> -> vector<32x128xf32>
    %c1_i32_44 = arith.constant 1 : i32
    %62 = tpu.dynamic_rotate %55 by %c1_i32_44 dim 0 : vector<32x128xf32>, i32 -> vector<32x128xf32>
    %63 = vector.broadcast %3 : vector<32x1xf32> to vector<32x128xf32>
    %64 = arith.mulf %63, %62 : vector<32x128xf32>
    %65 = arith.addf %58, %64 : vector<32x128xf32>
    %c31_i32_45 = arith.constant 31 : i32
    %66 = tpu.dynamic_rotate %61 by %c31_i32_45 dim 0 : vector<32x128xf32>, i32 -> vector<32x128xf32>
    %67 = vector.broadcast %4 : vector<32x1xf32> to vector<32x128xf32>
    %68 = arith.mulf %67, %66 : vector<32x128xf32>
    %69 = arith.addf %65, %68 : vector<32x128xf32>
    %c0_46 = arith.constant 0 : index
    %c0_47 = arith.constant 0 : index
    %70 = vector.load %arg5[%c0_46, %c0_47] : memref<1x8xf32, #tpu.memory_space<vmem>>, vector<1x8xf32>
    %c0_48 = arith.constant 0 : index
    %c0_49 = arith.constant 0 : index
    %71 = vector.load %arg6[%c0_48, %c0_49] : memref<1x8xf32, #tpu.memory_space<vmem>>, vector<1x8xf32>
    %cst_50 = arith.constant dense<0.000000e+00> : vector<128xf32>
    %72 = vector.multi_reduction <add>, %69, %cst_50 [0] : vector<32x128xf32> to vector<128xf32>
    %73 = vector.shape_cast %72 : vector<128xf32> to vector<1x128xf32>
    %74 = arith.mulf %69, %69 : vector<32x128xf32>
    %cst_51 = arith.constant dense<0.000000e+00> : vector<128xf32>
    %75 = vector.multi_reduction <add>, %74, %cst_51 [0] : vector<32x128xf32> to vector<128xf32>
    %76 = vector.shape_cast %75 : vector<128xf32> to vector<1x128xf32>
    %cst_52 = arith.constant dense<0.000000e+00> : vector<1x8xf32>
    %77 = tpu.matmul %73, %1, %cst_52 {dimension_numbers = #tpu.dot_dimension_numbers<[1], [0], [0], [1], [0, 0, 1, 1], [], []>} : vector<1x128xf32>, vector<128x8xf32>, vector<1x8xf32> -> vector<1x8xf32>
    %cst_53 = arith.constant 0.001953125 : f32
    %78 = vector.broadcast %cst_53 : f32 to vector<1x8xf32>
    %79 = arith.mulf %77, %78 : vector<1x8xf32>
    %cst_54 = arith.constant dense<0.000000e+00> : vector<1x8xf32>
    %80 = tpu.matmul %76, %1, %cst_54 {dimension_numbers = #tpu.dot_dimension_numbers<[1], [0], [0], [1], [0, 0, 1, 1], [], []>} : vector<1x128xf32>, vector<128x8xf32>, vector<1x8xf32> -> vector<1x8xf32>
    %cst_55 = arith.constant 0.001953125 : f32
    %81 = vector.broadcast %cst_55 : f32 to vector<1x8xf32>
    %82 = arith.mulf %80, %81 : vector<1x8xf32>
    %83 = arith.mulf %79, %79 : vector<1x8xf32>
    %84 = arith.subf %82, %83 : vector<1x8xf32>
    %cst_56 = arith.constant 9.99999974E-6 : f32
    %85 = vector.broadcast %cst_56 : f32 to vector<1x8xf32>
    %86 = arith.addf %84, %85 : vector<1x8xf32>
    %87 = math.rsqrt %86 : vector<1x8xf32>
    %88 = arith.mulf %70, %87 : vector<1x8xf32>
    %89 = arith.mulf %79, %88 : vector<1x8xf32>
    %90 = arith.subf %71, %89 : vector<1x8xf32>
    %cst_57 = arith.constant dense<0.000000e+00> : vector<1x128xf32>
    %91 = tpu.matmul %88, %2, %cst_57 {dimension_numbers = #tpu.dot_dimension_numbers<[1], [0], [0], [1], [0, 0, 1, 1], [], []>} : vector<1x8xf32>, vector<8x128xf32>, vector<1x128xf32> -> vector<1x128xf32>
    %cst_58 = arith.constant dense<0.000000e+00> : vector<1x128xf32>
    %92 = tpu.matmul %90, %2, %cst_58 {dimension_numbers = #tpu.dot_dimension_numbers<[1], [0], [0], [1], [0, 0, 1, 1], [], []>} : vector<1x8xf32>, vector<8x128xf32>, vector<1x128xf32> -> vector<1x128xf32>
    %93 = vector.broadcast %91 : vector<1x128xf32> to vector<32x128xf32>
    %94 = arith.mulf %69, %93 : vector<32x128xf32>
    %95 = vector.broadcast %92 : vector<1x128xf32> to vector<32x128xf32>
    %96 = arith.addf %94, %95 : vector<32x128xf32>
    %cst_59 = arith.constant 0.000000e+00 : f32
    %97 = vector.broadcast %cst_59 : f32 to vector<32x128xf32>
    %98 = arith.maximumf %96, %97 : vector<32x128xf32>
    %99 = arith.addf %98, %0 : vector<32x128xf32>
    %c0_60 = arith.constant 0 : index
    %c0_61 = arith.constant 0 : index
    %100 = vector.load %arg11[%c0_60, %c0_61] : memref<32x128xf32, #tpu.memory_space<vmem>>, vector<32x128xf32>
    tpu.vector_store %arg11[%c0_60, %c0_61], %99 {strides = array<i32>} : memref<32x128xf32, #tpu.memory_space<vmem>>, vector<32x128xf32>,
    return
  }
}

</mosaic_0001>

<llo_original>
// kernel: res_block_forward.1
$region0: #{res_block_forward.1}
  #allocation0 [shape = 'u32[]', space=smem, size = 0x4, offset = 0x4, fixed_abs, tag = 'smem constant byte address 0x4 - core index']
  #allocation1 [shape = 'u32[144,128]{1,0:T(1,128)}', space=vmem, size = 0x12000, scoped, tag = 'internal scratch']
  %s0 = inlined_call_operand.vmem [shape: f32[32,128], index: 0, kind: input, shape index: {}]
  %s1 = inlined_call_operand.vmem [shape: bf16[3,128,128], index: 1, kind: input, shape index: {}]
  %s2 = inlined_call_operand.vmem [shape: bf16[3,128,128], index: 2, kind: input, shape index: {}]
  %s3 = inlined_call_operand.vmem [shape: f32[1,8], index: 3, kind: input, shape index: {}]
  %s4 = inlined_call_operand.vmem [shape: f32[1,8], index: 4, kind: input, shape index: {}]
  %s5 = inlined_call_operand.vmem [shape: f32[1,8], index: 5, kind: input, shape index: {}]
  %s6 = inlined_call_operand.vmem [shape: f32[1,8], index: 6, kind: input, shape index: {}]
  %s7 = inlined_call_operand.vmem [shape: f32[128,8], index: 7, kind: input, shape index: {}]
  %s8 = inlined_call_operand.vmem [shape: f32[8,128], index: 8, kind: input, shape index: {}]
  %s9 = inlined_call_operand.vmem [shape: f32[32,1], index: 9, kind: input, shape index: {}]
  %s10 = inlined_call_operand.vmem [shape: f32[32,1], index: 10, kind: input, shape index: {}]
  %s11 = inlined_call_operand.vmem [shape: f32[32,128], index: 11, kind: output, shape index: {}]
  %s12 = sld [smem:[#allocation0]]
  $region54: #{res_block_forward.1} parent=0
    _
  %s14 = ssub.s32 1, %s12
  %s15 = scalar_select 0, %s14, %s12
  // Predicated region
  $region2: #{res_block_forward.1} parent=0 // pred_check
    _
  $region3: #{res_block_forward.1} parent=0 // pred_check_branch
    %17 = sbr.rel (0) target = $region5
  $region4: #{res_block_forward.1} parent=0 // pred_region
    _
  $region5: #{res_block_forward.1} parent=0 // pred_fallthru
    _
  // Predicated region
  $region6: #{res_block_forward.1} parent=0 // pred_check
    _
  $region7: #{res_block_forward.1} parent=0 // pred_check_branch
    %19 = sbr.rel (0) target = $region9
  $region8: #{res_block_forward.1} parent=0 // pred_region
    _
  $region9: #{res_block_forward.1} parent=0 // pred_fallthru
    _
  // Predicated region
  $region10: #{res_block_forward.1} parent=0 // pred_check
    _
  $region11: #{res_block_forward.1} parent=0 // pred_check_branch
    %21 = sbr.rel (0) target = $region13
  $region12: #{res_block_forward.1} parent=0 // pred_region
    _
  $region13: #{res_block_forward.1} parent=0 // pred_fallthru
    _
  // Predicated region
  $region14: #{res_block_forward.1} parent=0 // pred_check
    _
  $region15: #{res_block_forward.1} parent=0 // pred_check_branch
    %23 = sbr.rel (0) target = $region17
  $region16: #{res_block_forward.1} parent=0 // pred_region
    _
  $region17: #{res_block_forward.1} parent=0 // pred_fallthru
    _
  // Predicated region
  $region18: #{res_block_forward.1} parent=0 // pred_check
    _
  $region19: #{res_block_forward.1} parent=0 // pred_check_branch
    %25 = sbr.rel (0) target = $region21
  $region20: #{res_block_forward.1} parent=0 // pred_region
    _
  $region21: #{res_block_forward.1} parent=0 // pred_fallthru
    _
  // Predicated region
  $region22: #{res_block_forward.1} parent=0 // pred_check
    _
  $region23: #{res_block_forward.1} parent=0 // pred_check_branch
    %27 = sbr.rel (0) target = $region25
  $region24: #{res_block_forward.1} parent=0 // pred_region
    _
  $region25: #{res_block_forward.1} parent=0 // pred_fallthru
    _
  // Predicated region
  $region26: #{res_block_forward.1} parent=0 // pred_check
    _
  $region27: #{res_block_forward.1} parent=0 // pred_check_branch
    %29 = sbr.rel (0) target = $region29
  $region28: #{res_block_forward.1} parent=0 // pred_region
    _
  $region29: #{res_block_forward.1} parent=0 // pred_fallthru
    _
  // Predicated region
  $region30: #{res_block_forward.1} parent=0 // pred_check
    _
  $region31: #{res_block_forward.1} parent=0 // pred_check_branch
    %31 = sbr.rel (0) target = $region33
  $region32: #{res_block_forward.1} parent=0 // pred_region
    _
  $region33: #{res_block_forward.1} parent=0 // pred_fallthru
    _
  // Predicated region
  $region34: #{res_block_forward.1} parent=0 // pred_check
    _
  $region35: #{res_block_forward.1} parent=0 // pred_check_branch
    %33 = sbr.rel (0) target = $region37
  $region36: #{res_block_forward.1} parent=0 // pred_region
    _
  $region37: #{res_block_forward.1} parent=0 // pred_fallthru
    _
  // Predicated region
  $region38: #{res_block_forward.1} parent=0 // pred_check
    _
  $region39: #{res_block_forward.1} parent=0 // pred_check_branch
    %35 = sbr.rel (0) target = $region41
  $region40: #{res_block_forward.1} parent=0 // pred_region
    _
  $region41: #{res_block_forward.1} parent=0 // pred_fallthru
    _
  // Predicated region
  $region42: #{res_block_forward.1} parent=0 // pred_check
    _
  $region43: #{res_block_forward.1} parent=0 // pred_check_branch
    %37 = sbr.rel (0) target = $region45
  $region44: #{res_block_forward.1} parent=0 // pred_region
    _
  $region45: #{res_block_forward.1} parent=0 // pred_fallthru
    _
  %v39 = vld [vmem:[%s0] sm:$0xff]
  %v40 = vld [vmem:[%s0 + $0x8] sm:$0xff]
  %v41 = vld [vmem:[%s0 + $0x10] sm:$0xff]
  %v42 = vld [vmem:[%s0 + $0x18] sm:$0xff]
  %v43 = vld [vmem:[%s7] sm:$0xff]
  %v44 = vld [vmem:[%s7 + $0x8] sm:$0xff]
  %v45 = vld [vmem:[%s7 + $0x10] sm:$0xff]
  %v46 = vld [vmem:[%s7 + $0x18] sm:$0xff]
  %v47 = vld [vmem:[%s7 + $0x20] sm:$0xff]
  %v48 = vld [vmem:[%s7 + $0x28] sm:$0xff]
  %v49 = vld [vmem:[%s7 + $0x30] sm:$0xff]
  %v50 = vld [vmem:[%s7 + $0x38] sm:$0xff]
  %v51 = vld [vmem:[%s7 + $0x40] sm:$0xff]
  %v52 = vld [vmem:[%s7 + $0x48] sm:$0xff]
  %v53 = vld [vmem:[%s7 + $0x50] sm:$0xff]
  %v54 = vld [vmem:[%s7 + $0x58] sm:$0xff]
  %v55 = vld [vmem:[%s7 + $0x60] sm:$0xff]
  %v56 = vld [vmem:[%s7 + $0x68] sm:$0xff]
  %v57 = vld [vmem:[%s7 + $0x70] sm:$0xff]
  %v58 = vld [vmem:[%s7 + $0x78] sm:$0xff]
  %v59 = vld [vmem:[%s8] sm:$0xff]
  %v60 = vld [vmem:[%s9] sm:$0xff]
  %v61 = vld [vmem:[%s9 + $0x8] sm:$0xff]
  %v62 = vld [vmem:[%s9 + $0x10] sm:$0xff]
  %v63 = vld [vmem:[%s9 + $0x18] sm:$0xff]
  %v64 = vld [vmem:[%s10] sm:$0xff]
  %v65 = vld [vmem:[%s10 + $0x8] sm:$0xff]
  %v66 = vld [vmem:[%s10 + $0x10] sm:$0xff]
  %v67 = vld [vmem:[%s10 + $0x18] sm:$0xff]
  %v68 = vpack.c.bf16 %v40, %v39
  %v69 = vpack.c.bf16 %v42, %v41
  %v70 = vld [vmem:[%s1] sm:$0xf]
  %v71 = vld [vmem:[%s1 + $0x4] sm:$0xf]
  %v72 = vld [vmem:[%s1 + $0x8] sm:$0xf]
  %v73 = vld [vmem:[%s1 + $0xc] sm:$0xf]
  %v74 = vld [vmem:[%s1 + $0x10] sm:$0xf]
  %v75 = vld [vmem:[%s1 + $0x14] sm:$0xf]
  %v76 = vld [vmem:[%s1 + $0x18] sm:$0xf]
  %v77 = vld [vmem:[%s1 + $0x1c] sm:$0xf]
  %v78 = vld [vmem:[%s1 + $0x20] sm:$0xf]
  %v79 = vld [vmem:[%s1 + $0x24] sm:$0xf]
  %v80 = vld [vmem:[%s1 + $0x28] sm:$0xf]
  %v81 = vld [vmem:[%s1 + $0x2c] sm:$0xf]
  %v82 = vld [vmem:[%s1 + $0x30] sm:$0xf]
  %v83 = vld [vmem:[%s1 + $0x34] sm:$0xf]
  %v84 = vld [vmem:[%s1 + $0x38] sm:$0xf]
  %v85 = vld [vmem:[%s1 + $0x3c] sm:$0xf]
  %v102 = vunpack.c.l.b16 %v70
  %v103 = vunpack.c.l.b16 %v71
  %v104 = vunpack.c.l.b16 %v72
  %v105 = vunpack.c.l.b16 %v73
  %v106 = vunpack.c.l.b16 %v74
  %v107 = vunpack.c.l.b16 %v75
  %v108 = vunpack.c.l.b16 %v76
  %v109 = vunpack.c.l.b16 %v77
  %v110 = vunpack.c.l.b16 %v78
  %v111 = vunpack.c.l.b16 %v79
  %v112 = vunpack.c.l.b16 %v80
  %v113 = vunpack.c.l.b16 %v81
  %v114 = vunpack.c.l.b16 %v82
  %v115 = vunpack.c.l.b16 %v83
  %v116 = vunpack.c.l.b16 %v84
  %v117 = vunpack.c.l.b16 %v85
  %v118 = vpack.c.b16 %v103, %v102
  %v119 = vpack.c.b16 %v105, %v104
  %v120 = vpack.c.b16 %v107, %v106
  %v121 = vpack.c.b16 %v109, %v108
  %v122 = vpack.c.b16 %v111, %v110
  %v123 = vpack.c.b16 %v113, %v112
  %v124 = vpack.c.b16 %v115, %v114
  %v125 = vpack.c.b16 %v117, %v116
  %134 = vmatprep.subr.bf16.mxu0 0
  %135 = vmatpush1.bf16.msra.mxu0 %v125
  %136 = vmatprep.subr.bf16.mxu0 0
  %137 = vmatpush1.bf16.msra.mxu0 %v124
  %138 = vmatprep.subr.bf16.mxu0 0
  %139 = vmatpush1.bf16.msra.mxu0 %v123
  %140 = vmatprep.subr.bf16.mxu0 0
  %141 = vmatpush1.bf16.msra.mxu0 %v122
  %142 = vmatprep.subr.bf16.mxu0 0
  %143 = vmatpush1.bf16.msra.mxu0 %v121
  %144 = vmatprep.subr.bf16.mxu0 0
  %145 = vmatpush1.bf16.msra.mxu0 %v120
  %146 = vmatprep.subr.bf16.mxu0 0
  %147 = vmatpush1.bf16.msra.mxu0 %v119
  %148 = vmatprep.subr.bf16.mxu0 0
  %149 = vmatpush1.bf16.msra.mxu0 %v118
  %150 = vmatprep.subr.bf16.mxu0 0
  %151 = vmatpush2.bf16.msra.mxu0 0
  %152 = vmatprep.subr.bf16.mxu0 0
  %153 = vmatpush2.bf16.msra.mxu0 0
  %154 = vmatprep.subr.bf16.mxu0 0
  %155 = vmatpush2.bf16.msra.mxu0 0
  %156 = vmatprep.subr.bf16.mxu0 0
  %157 = vmatpush2.bf16.msra.mxu0 0
  %158 = vmatprep.subr.bf16.mxu0 0
  %159 = vmatpush2.bf16.msra.mxu0 0
  %160 = vmatprep.subr.bf16.mxu0 0
  %161 = vmatpush2.bf16.msra.mxu0 0
  %162 = vmatprep.subr.bf16.mxu0 0
  %163 = vmatpush2.bf16.msra.mxu0 0
  %164 = vmatprep.subr.bf16.mxu0 0
  %165 = vmatpush2.bf16.msra.mxu0 0
  %166 = vmatprep.mubr.bf16.mxu0 0
  %167 = vmatmul.mubr.bf16.gmra.mxu0 %v68
  %v168 = vpop.f32.mrf.mxu0
  %v169 = vadd.f32 0.0, %v168
  %v170 = vpop.f32.mrf.mxu0
  %v171 = vpop.f32.mrf.mxu0
  %v172 = vadd.f32 0.0, %v171
  %v173 = vpop.f32.mrf.mxu0
  %174 = vmatprep.mubr.bf16.mxu0 0
  %175 = vmatmul.mubr.bf16.gmra.mxu0 %v69
  %v176 = vpop.f32.mrf.mxu0
  %v177 = vadd.f32 0.0, %v176
  %v178 = vpop.f32.mrf.mxu0
  %v179 = vpop.f32.mrf.mxu0
  %v180 = vadd.f32 0.0, %v179
  %v181 = vpop.f32.mrf.mxu0
  %182 = vdwg.mxu0
  %s183 = scalar_lea.vmem %s1, 64
  %v184 = vld [vmem:[%s183] sm:$0xf]
  %v185 = vld [vmem:[%s183 + $0x4] sm:$0xf]
  %v186 = vld [vmem:[%s183 + $0x8] sm:$0xf]
  %v187 = vld [vmem:[%s183 + $0xc] sm:$0xf]
  %v188 = vld [vmem:[%s183 + $0x10] sm:$0xf]
  %v189 = vld [vmem:[%s183 + $0x14] sm:$0xf]
  %v190 = vld [vmem:[%s183 + $0x18] sm:$0xf]
  %v191 = vld [vmem:[%s183 + $0x1c] sm:$0xf]
  %v192 = vld [vmem:[%s183 + $0x20] sm:$0xf]
  %v193 = vld [vmem:[%s183 + $0x24] sm:$0xf]
  %v194 = vld [vmem:[%s183 + $0x28] sm:$0xf]
  %v195 = vld [vmem:[%s183 + $0x2c] sm:$0xf]
  %v196 = vld [vmem:[%s183 + $0x30] sm:$0xf]
  %v197 = vld [vmem:[%s183 + $0x34] sm:$0xf]
  %v198 = vld [vmem:[%s183 + $0x38] sm:$0xf]
  %v199 = vld [vmem:[%s183 + $0x3c] sm:$0xf]
  %s200 = scalar_lea.vmem %s1, 128
  %v201 = vld [vmem:[%s200] sm:$0xf]
  %v202 = vld [vmem:[%s200 + $0x4] sm:$0xf]
  %v203 = vld [vmem:[%s200 + $0x8] sm:$0xf]
  %v204 = vld [vmem:[%s200 + $0xc] sm:$0xf]
  %v205 = vld [vmem:[%s200 + $0x10] sm:$0xf]
  %v206 = vld [vmem:[%s200 + $0x14] sm:$0xf]
  %v207 = vld [vmem:[%s200 + $0x18] sm:$0xf]
  %v208 = vld [vmem:[%s200 + $0x1c] sm:$0xf]
  %v209 = vld [vmem:[%s200 + $0x20] sm:$0xf]
  %v210 = vld [vmem:[%s200 + $0x24] sm:$0xf]
  %v211 = vld [vmem:[%s200 + $0x28] sm:$0xf]
  %v212 = vld [vmem:[%s200 + $0x2c] sm:$0xf]
  %v213 = vld [vmem:[%s200 + $0x30] sm:$0xf]
  %v214 = vld [vmem:[%s200 + $0x34] sm:$0xf]
  %v215 = vld [vmem:[%s200 + $0x38] sm:$0xf]
  %v216 = vld [vmem:[%s200 + $0x3c] sm:$0xf]
  %v233 = vunpack.c.l.b16 %v201
  %v234 = vunpack.c.l.b16 %v202
  %v235 = vunpack.c.l.b16 %v203
  %v236 = vunpack.c.l.b16 %v204
  %v237 = vunpack.c.l.b16 %v205
  %v238 = vunpack.c.l.b16 %v206
  %v239 = vunpack.c.l.b16 %v207
  %v240 = vunpack.c.l.b16 %v208
  %v241 = vunpack.c.l.b16 %v209
  %v242 = vunpack.c.l.b16 %v210
  %v243 = vunpack.c.l.b16 %v211
  %v244 = vunpack.c.l.b16 %v212
  %v245 = vunpack.c.l.b16 %v213
  %v246 = vunpack.c.l.b16 %v214
  %v247 = vunpack.c.l.b16 %v215
  %v248 = vunpack.c.l.b16 %v216
  %v249 = vpack.c.b16 %v234, %v233
  %v250 = vpack.c.b16 %v236, %v235
  %v251 = vpack.c.b16 %v238, %v237
  %v252 = vpack.c.b16 %v240, %v239
  %v253 = vpack.c.b16 %v242, %v241
  %v254 = vpack.c.b16 %v244, %v243
  %v255 = vpack.c.b16 %v246, %v245
  %v256 = vpack.c.b16 %v248, %v247
  %265 = vmatprep.subr.bf16.mxu0 0
  %266 = vmatpush1.bf16.msra.mxu0 %v256
  %267 = vmatprep.subr.bf16.mxu0 0
  %268 = vmatpush1.bf16.msra.mxu0 %v255
  %269 = vmatprep.subr.bf16.mxu0 0
  %270 = vmatpush1.bf16.msra.mxu0 %v254
  %271 = vmatprep.subr.bf16.mxu0 0
  %272 = vmatpush1.bf16.msra.mxu0 %v253
  %273 = vmatprep.subr.bf16.mxu0 0
  %274 = vmatpush1.bf16.msra.mxu0 %v252
  %275 = vmatprep.subr.bf16.mxu0 0
  %276 = vmatpush1.bf16.msra.mxu0 %v251
  %277 = vmatprep.subr.bf16.mxu0 0
  %278 = vmatpush1.bf16.msra.mxu0 %v250
  %279 = vmatprep.subr.bf16.mxu0 0
  %280 = vmatpush1.bf16.msra.mxu0 %v249
  %281 = vmatprep.subr.bf16.mxu0 0
  %282 = vmatpush2.bf16.msra.mxu0 0
  %283 = vmatprep.subr.bf16.mxu0 0
  %284 = vmatpush2.bf16.msra.mxu0 0
  %285 = vmatprep.subr.bf16.mxu0 0
  %286 = vmatpush2.bf16.msra.mxu0 0
  %287 = vmatprep.subr.bf16.mxu0 0
  %288 = vmatpush2.bf16.msra.mxu0 0
  %289 = vmatprep.subr.bf16.mxu0 0
  %290 = vmatpush2.bf16.msra.mxu0 0
  %291 = vmatprep.subr.bf16.mxu0 0
  %292 = vmatpush2.bf16.msra.mxu0 0
  %293 = vmatprep.subr.bf16.mxu0 0
  %294 = vmatpush2.bf16.msra.mxu0 0
  %295 = vmatprep.subr.bf16.mxu0 0
  %296 = vmatpush2.bf16.msra.mxu0 0
  %297 = vmatprep.mubr.bf16.mxu0 0
  %298 = vmatmul.mubr.bf16.gmra.mxu0 %v68
  %v299 = vpop.f32.mrf.mxu0
  %v300 = vadd.f32 0.0, %v299
  %v301 = vpop.f32.mrf.mxu0
  %v302 = vpop.f32.mrf.mxu0
  %v303 = vadd.f32 0.0, %v302
  %v304 = vpop.f32.mrf.mxu0
  %305 = vmatprep.mubr.bf16.mxu0 0
  %306 = vmatmul.mubr.bf16.gmra.mxu0 %v69
  %v307 = vpop.f32.mrf.mxu0
  %v308 = vadd.f32 0.0, %v307
  %v309 = vpop.f32.mrf.mxu0
  %v310 = vpop.f32.mrf.mxu0
  %v311 = vadd.f32 0.0, %v310
  %v312 = vpop.f32.mrf.mxu0
  %313 = vdwg.mxu0
  %v314 = vrot.slane %v169, 7
  %v315 = vrot.slane %v172, 7
  %v316 = vrot.slane %v177, 7
  %v317 = vrot.slane %v180, 7
  %v318 = vlaneseq
  %v319 = vshrl.u32 %v318, 7
  %vm320 = vcmp.lt.s32.totalorder %v319, 1
  %v321 = vsel %vm320, %v316, %v317
  %v322 = vsel %vm320, %v315, %v316
  %v323 = vsel %vm320, %v314, %v315
  %v324 = vsel %vm320, %v317, %v314
  %326 = vset.pattern.permute.xlu0 0
  %327 = vperm.xlu0 %326, %v60
  %v328 = vpop.permute.xlu0 %327
  %331 = vset.pattern.permute.xlu0 0
  %332 = vperm.xlu0 %331, %v61
  %v333 = vpop.permute.xlu0 %332
  %336 = vset.pattern.permute.xlu0 0
  %337 = vperm.xlu0 %336, %v62
  %v338 = vpop.permute.xlu0 %337
  %341 = vset.pattern.permute.xlu0 0
  %342 = vperm.xlu0 %341, %v63
  %v343 = vpop.permute.xlu0 %342
  %v345 = vmul.f32 %v328, %v324
  %v346 = vmul.f32 %v333, %v323
  %v347 = vmul.f32 %v338, %v322
  %v348 = vmul.f32 %v343, %v321
  %v365 = vunpack.c.l.b16 %v184
  %v366 = vunpack.c.l.b16 %v185
  %v367 = vunpack.c.l.b16 %v186
  %v368 = vunpack.c.l.b16 %v187
  %v369 = vunpack.c.l.b16 %v188
  %v370 = vunpack.c.l.b16 %v189
  %v371 = vunpack.c.l.b16 %v190
  %v372 = vunpack.c.l.b16 %v191
  %v373 = vunpack.c.l.b16 %v192
  %v374 = vunpack.c.l.b16 %v193
  %v375 = vunpack.c.l.b16 %v194
  %v376 = vunpack.c.l.b16 %v195
  %v377 = vunpack.c.l.b16 %v196
  %v378 = vunpack.c.l.b16 %v197
  %v379 = vunpack.c.l.b16 %v198
  %v380 = vunpack.c.l.b16 %v199
  %v381 = vpack.c.b16 %v366, %v365
  %v382 = vpack.c.b16 %v368, %v367
  %v383 = vpack.c.b16 %v370, %v369
  %v384 = vpack.c.b16 %v372, %v371
  %v385 = vpack.c.b16 %v374, %v373
  %v386 = vpack.c.b16 %v376, %v375
  %v387 = vpack.c.b16 %v378, %v377
  %v388 = vpack.c.b16 %v380, %v379
  %397 = vmatprep.subr.bf16.mxu0 0
  %398 = vmatpush1.bf16.msra.mxu0 %v388
  %399 = vmatprep.subr.bf16.mxu0 0
  %400 = vmatpush1.bf16.msra.mxu0 %v387
  %401 = vmatprep.subr.bf16.mxu0 0
  %402 = vmatpush1.bf16.msra.mxu0 %v386
  %403 = vmatprep.subr.bf16.mxu0 0
  %404 = vmatpush1.bf16.msra.mxu0 %v385
  %405 = vmatprep.subr.bf16.mxu0 0
  %406 = vmatpush1.bf16.msra.mxu0 %v384
  %407 = vmatprep.subr.bf16.mxu0 0
  %408 = vmatpush1.bf16.msra.mxu0 %v383
  %409 = vmatprep.subr.bf16.mxu0 0
  %410 = vmatpush1.bf16.msra.mxu0 %v382
  %411 = vmatprep.subr.bf16.mxu0 0
  %412 = vmatpush1.bf16.msra.mxu0 %v381
  %413 = vmatprep.subr.bf16.mxu0 0
  %414 = vmatpush2.bf16.msra.mxu0 0
  %415 = vmatprep.subr.bf16.mxu0 0
  %416 = vmatpush2.bf16.msra.mxu0 0
  %417 = vmatprep.subr.bf16.mxu0 0
  %418 = vmatpush2.bf16.msra.mxu0 0
  %419 = vmatprep.subr.bf16.mxu0 0
  %420 = vmatpush2.bf16.msra.mxu0 0
  %421 = vmatprep.subr.bf16.mxu0 0
  %422 = vmatpush2.bf16.msra.mxu0 0
  %423 = vmatprep.subr.bf16.mxu0 0
  %424 = vmatpush2.bf16.msra.mxu0 0
  %425 = vmatprep.subr.bf16.mxu0 0
  %426 = vmatpush2.bf16.msra.mxu0 0
  %427 = vmatprep.subr.bf16.mxu0 0
  %428 = vmatpush2.bf16.msra.mxu0 0
  %429 = vmatprep.mubr.bf16.mxu0 0
  %430 = vmatmul.mubr.bf16.gmra.mxu0 %v68
  %v431 = vpop.f32.mrf.mxu0
  %v432 = vadd.f32 %v345, %v431
  %v433 = vpop.f32.mrf.mxu0
  %v434 = vpop.f32.mrf.mxu0
  %v435 = vadd.f32 %v346, %v434
  %v436 = vpop.f32.mrf.mxu0
  %437 = vmatprep.mubr.bf16.mxu0 0
  %438 = vmatmul.mubr.bf16.gmra.mxu0 %v69
  %v439 = vpop.f32.mrf.mxu0
  %v440 = vadd.f32 %v347, %v439
  %v441 = vpop.f32.mrf.mxu0
  %v442 = vpop.f32.mrf.mxu0
  %v443 = vadd.f32 %v348, %v442
  %v444 = vpop.f32.mrf.mxu0
  %445 = vdwg.mxu0
  %v446 = vrot.slane %v300, 1
  %v447 = vrot.slane %v303, 1
  %v448 = vrot.slane %v308, 1
  %v449 = vrot.slane %v311, 1
  %vm450 = vcmp.lt.s32.totalorder %v319, 7
  %v451 = vsel %vm450, %v448, %v449
  %v452 = vsel %vm450, %v447, %v448
  %v453 = vsel %vm450, %v446, %v447
  %v454 = vsel %vm450, %v449, %v446
  %456 = vset.pattern.permute.xlu0 0
  %457 = vperm.xlu0 %456, %v64
  %v458 = vpop.permute.xlu0 %457
  %461 = vset.pattern.permute.xlu0 0
  %462 = vperm.xlu0 %461, %v65
  %v463 = vpop.permute.xlu0 %462
  %466 = vset.pattern.permute.xlu0 0
  %467 = vperm.xlu0 %466, %v66
  %v468 = vpop.permute.xlu0 %467
  %471 = vset.pattern.permute.xlu0 0
  %472 = vperm.xlu0 %471, %v67
  %v473 = vpop.permute.xlu0 %472
  %v475 = vmul.f32 %v458, %v453
  %v476 = vmul.f32 %v463, %v452
  %v477 = vmul.f32 %v468, %v451
  %v478 = vmul.f32 %v473, %v454
  %v479 = vadd.f32 %v432, %v475
  %v480 = vadd.f32 %v435, %v476
  %v481 = vadd.f32 %v440, %v477
  %v482 = vadd.f32 %v443, %v478
  %v483 = vld [vmem:[%s3] sm:$0x1]
  %v484 = vld [vmem:[%s4] sm:$0x1]
  %v485 = vadd.f32 %v479, %v480
  %v486 = vadd.f32 %v485, %v481
  %v487 = vadd.f32 %v486, %v482
  %v488 = vrot.slane %v487, 4
  %v489 = vadd.f32 %v487, %v488
  %v490 = vrot.slane %v489, 2
  %v491 = vadd.f32 %v489, %v490
  %v492 = vrot.slane %v491, 1
  %v493 = vadd.f32 %v491, %v492
  %v494 = vmul.f32 %v479, %v479
  %v495 = vmul.f32 %v480, %v480
  %v496 = vmul.f32 %v481, %v481
  %v497 = vmul.f32 %v482, %v482
  %v498 = vadd.f32 %v494, %v495
  %v499 = vadd.f32 %v498, %v496
  %v500 = vadd.f32 %v499, %v497
  %v501 = vrot.slane %v500, 4
  %v502 = vadd.f32 %v500, %v501
  %v503 = vrot.slane %v502, 2
  %v504 = vadd.f32 %v502, %v503
  %v505 = vrot.slane %v504, 1
  %v506 = vadd.f32 %v504, %v505
  %507 = vmatprep.subr.mxu0 0.0
  %508 = vmatpush1.msra.mxu0 %v58
  %509 = vmatprep.subr.mxu0 0.0
  %510 = vmatpush1.msra.mxu0 %v57
  %511 = vmatprep.subr.mxu0 0.0
  %512 = vmatpush1.msra.mxu0 %v56
  %513 = vmatprep.subr.mxu0 0.0
  %514 = vmatpush1.msra.mxu0 %v55
  %515 = vmatprep.subr.mxu0 0.0
  %516 = vmatpush1.msra.mxu0 %v54
  %517 = vmatprep.subr.mxu0 0.0
  %518 = vmatpush1.msra.mxu0 %v53
  %519 = vmatprep.subr.mxu0 0.0
  %520 = vmatpush1.msra.mxu0 %v52
  %521 = vmatprep.subr.mxu0 0.0
  %522 = vmatpush1.msra.mxu0 %v51
  %523 = vmatprep.subr.mxu0 0.0
  %524 = vmatpush1.msra.mxu0 %v50
  %525 = vmatprep.subr.mxu0 0.0
  %526 = vmatpush1.msra.mxu0 %v49
  %527 = vmatprep.subr.mxu0 0.0
  %528 = vmatpush1.msra.mxu0 %v48
  %529 = vmatprep.subr.mxu0 0.0
  %530 = vmatpush1.msra.mxu0 %v47
  %531 = vmatprep.subr.mxu0 0.0
  %532 = vmatpush1.msra.mxu0 %v46
  %533 = vmatprep.subr.mxu0 0.0
  %534 = vmatpush1.msra.mxu0 %v45
  %535 = vmatprep.subr.mxu0 0.0
  %536 = vmatpush1.msra.mxu0 %v44
  %537 = vmatprep.subr.mxu0 0.0
  %538 = vmatpush1.msra.mxu0 %v43
  %539 = vmatprep.subr.mxu0 0.0
  %540 = vmatpush2.msra.mxu0 0.0
  %541 = vmatprep.subr.mxu0 0.0
  %542 = vmatpush2.msra.mxu0 0.0
  %543 = vmatprep.subr.mxu0 0.0
  %544 = vmatpush2.msra.mxu0 0.0
  %545 = vmatprep.subr.mxu0 0.0
  %546 = vmatpush2.msra.mxu0 0.0
  %547 = vmatprep.subr.mxu0 0.0
  %548 = vmatpush2.msra.mxu0 0.0
  %549 = vmatprep.subr.mxu0 0.0
  %550 = vmatpush2.msra.mxu0 0.0
  %551 = vmatprep.subr.mxu0 0.0
  %552 = vmatpush2.msra.mxu0 0.0
  %553 = vmatprep.subr.mxu0 0.0
  %554 = vmatpush2.msra.mxu0 0.0
  %555 = vmatprep.subr.mxu0 0.0
  %556 = vmatpush2.msra.mxu0 0.0
  %557 = vmatprep.subr.mxu0 0.0
  %558 = vmatpush2.msra.mxu0 0.0
  %559 = vmatprep.subr.mxu0 0.0
  %560 = vmatpush2.msra.mxu0 0.0
  %561 = vmatprep.subr.mxu0 0.0
  %562 = vmatpush2.msra.mxu0 0.0
  %563 = vmatprep.subr.mxu0 0.0
  %564 = vmatpush2.msra.mxu0 0.0
  %565 = vmatprep.subr.mxu0 0.0
  %566 = vmatpush2.msra.mxu0 0.0
  %567 = vmatprep.subr.mxu0 0.0
  %568 = vmatpush2.msra.mxu0 0.0
  %569 = vmatprep.subr.mxu0 0.0
  %570 = vmatpush2.msra.mxu0 0.0
  %571 = vmatprep.mubr.f32.mxu0 0.0
  %572 = vmatmul.mubr.f32.gmra.mxu0 %v493
  %v573 = vpop.f32.mrf.mxu0
  %v574 = vadd.f32 0.0, %v573
  %v575 = vpop.f32.mrf.mxu0
  %576 = vdwg.mxu0
  %v577 = vmul.f32 %v574, 0.001953125
  %578 = vmatprep.subr.mxu0 0.0
  %579 = vmatpush1.msra.mxu0 %v58
  %580 = vmatprep.subr.mxu0 0.0
  %581 = vmatpush1.msra.mxu0 %v57
  %582 = vmatprep.subr.mxu0 0.0
  %583 = vmatpush1.msra.mxu0 %v56
  %584 = vmatprep.subr.mxu0 0.0
  %585 = vmatpush1.msra.mxu0 %v55
  %586 = vmatprep.subr.mxu0 0.0
  %587 = vmatpush1.msra.mxu0 %v54
  %588 = vmatprep.subr.mxu0 0.0
  %589 = vmatpush1.msra.mxu0 %v53
  %590 = vmatprep.subr.mxu0 0.0
  %591 = vmatpush1.msra.mxu0 %v52
  %592 = vmatprep.subr.mxu0 0.0
  %593 = vmatpush1.msra.mxu0 %v51
  %594 = vmatprep.subr.mxu0 0.0
  %595 = vmatpush1.msra.mxu0 %v50
  %596 = vmatprep.subr.mxu0 0.0
  %597 = vmatpush1.msra.mxu0 %v49
  %598 = vmatprep.subr.mxu0 0.0
  %599 = vmatpush1.msra.mxu0 %v48
  %600 = vmatprep.subr.mxu0 0.0
  %601 = vmatpush1.msra.mxu0 %v47
  %602 = vmatprep.subr.mxu0 0.0
  %603 = vmatpush1.msra.mxu0 %v46
  %604 = vmatprep.subr.mxu0 0.0
  %605 = vmatpush1.msra.mxu0 %v45
  %606 = vmatprep.subr.mxu0 0.0
  %607 = vmatpush1.msra.mxu0 %v44
  %608 = vmatprep.subr.mxu0 0.0
  %609 = vmatpush1.msra.mxu0 %v43
  %610 = vmatprep.subr.mxu0 0.0
  %611 = vmatpush2.msra.mxu0 0.0
  %612 = vmatprep.subr.mxu0 0.0
  %613 = vmatpush2.msra.mxu0 0.0
  %614 = vmatprep.subr.mxu0 0.0
  %615 = vmatpush2.msra.mxu0 0.0
  %616 = vmatprep.subr.mxu0 0.0
  %617 = vmatpush2.msra.mxu0 0.0
  %618 = vmatprep.subr.mxu0 0.0
  %619 = vmatpush2.msra.mxu0 0.0
  %620 = vmatprep.subr.mxu0 0.0
  %621 = vmatpush2.msra.mxu0 0.0
  %622 = vmatprep.subr.mxu0 0.0
  %623 = vmatpush2.msra.mxu0 0.0
  %624 = vmatprep.subr.mxu0 0.0
  %625 = vmatpush2.msra.mxu0 0.0
  %626 = vmatprep.subr.mxu0 0.0
  %627 = vmatpush2.msra.mxu0 0.0
  %628 = vmatprep.subr.mxu0 0.0
  %629 = vmatpush2.msra.mxu0 0.0
  %630 = vmatprep.subr.mxu0 0.0
  %631 = vmatpush2.msra.mxu0 0.0
  %632 = vmatprep.subr.mxu0 0.0
  %633 = vmatpush2.msra.mxu0 0.0
  %634 = vmatprep.subr.mxu0 0.0
  %635 = vmatpush2.msra.mxu0 0.0
  %636 = vmatprep.subr.mxu0 0.0
  %637 = vmatpush2.msra.mxu0 0.0
  %638 = vmatprep.subr.mxu0 0.0
  %639 = vmatpush2.msra.mxu0 0.0
  %640 = vmatprep.subr.mxu0 0.0
  %641 = vmatpush2.msra.mxu0 0.0
  %642 = vmatprep.mubr.f32.mxu0 0.0
  %643 = vmatmul.mubr.f32.gmra.mxu0 %v506
  %v644 = vpop.f32.mrf.mxu0
  %v645 = vadd.f32 0.0, %v644
  %v646 = vpop.f32.mrf.mxu0
  %647 = vdwg.mxu0
  %v648 = vmul.f32 %v645, 0.001953125
  %v649 = vmul.f32 %v577, %v577
  %v650 = vsub.f32 %v648, %v649
  %v651 = vadd.f32 %v650, 1e-05
  %v652 = vrsqrt.pop %v651
  %v653 = vmul.f32 %v483, %v652
  %v654 = vmul.f32 %v577, %v653
  %v655 = vsub.f32 %v484, %v654
  %vm656 = vcmask 64512
  %v658 = vsel %vm656, %v653, 0
  %660 = vmatprep.subr.mxu0 0.0
  %661 = vmatpush1.msra.mxu0 0.0
  %662 = vmatprep.subr.mxu0 0.0
  %663 = vmatpush1.msra.mxu0 0.0
  %664 = vmatprep.subr.mxu0 0.0
  %665 = vmatpush1.msra.mxu0 0.0
  %666 = vmatprep.subr.mxu0 0.0
  %667 = vmatpush1.msra.mxu0 0.0
  %668 = vmatprep.subr.mxu0 0.0
  %669 = vmatpush1.msra.mxu0 0.0
  %670 = vmatprep.subr.mxu0 0.0
  %671 = vmatpush1.msra.mxu0 0.0
  %672 = vmatprep.subr.mxu0 0.0
  %673 = vmatpush1.msra.mxu0 0.0
  %674 = vmatprep.subr.mxu0 0.0
  %675 = vmatpush1.msra.mxu0 0.0
  %676 = vmatprep.subr.mxu0 0.0
  %677 = vmatpush1.msra.mxu0 0.0
  %678 = vmatprep.subr.mxu0 0.0
  %679 = vmatpush1.msra.mxu0 0.0
  %680 = vmatprep.subr.mxu0 0.0
  %681 = vmatpush1.msra.mxu0 0.0
  %682 = vmatprep.subr.mxu0 0.0
  %683 = vmatpush1.msra.mxu0 0.0
  %684 = vmatprep.subr.mxu0 0.0
  %685 = vmatpush1.msra.mxu0 0.0
  %686 = vmatprep.subr.mxu0 0.0
  %687 = vmatpush1.msra.mxu0 0.0
  %688 = vmatprep.subr.mxu0 0.0
  %689 = vmatpush1.msra.mxu0 0.0
  %690 = vmatprep.subr.mxu0 0.0
  %691 = vmatpush1.msra.mxu0 %v59
  %692 = vmatprep.subr.mxu0 0.0
  %693 = vmatpush2.msra.mxu0 0.0
  %694 = vmatprep.subr.mxu0 0.0
  %695 = vmatpush2.msra.mxu0 0.0
  %696 = vmatprep.subr.mxu0 0.0
  %697 = vmatpush2.msra.mxu0 0.0
  %698 = vmatprep.subr.mxu0 0.0
  %699 = vmatpush2.msra.mxu0 0.0
  %700 = vmatprep.subr.mxu0 0.0
  %701 = vmatpush2.msra.mxu0 0.0
  %702 = vmatprep.subr.mxu0 0.0
  %703 = vmatpush2.msra.mxu0 0.0
  %704 = vmatprep.subr.mxu0 0.0
  %705 = vmatpush2.msra.mxu0 0.0
  %706 = vmatprep.subr.mxu0 0.0
  %707 = vmatpush2.msra.mxu0 0.0
  %708 = vmatprep.subr.mxu0 0.0
  %709 = vmatpush2.msra.mxu0 0.0
  %710 = vmatprep.subr.mxu0 0.0
  %711 = vmatpush2.msra.mxu0 0.0
  %712 = vmatprep.subr.mxu0 0.0
  %713 = vmatpush2.msra.mxu0 0.0
  %714 = vmatprep.subr.mxu0 0.0
  %715 = vmatpush2.msra.mxu0 0.0
  %716 = vmatprep.subr.mxu0 0.0
  %717 = vmatpush2.msra.mxu0 0.0
  %718 = vmatprep.subr.mxu0 0.0
  %719 = vmatpush2.msra.mxu0 0.0
  %720 = vmatprep.subr.mxu0 0.0
  %721 = vmatpush2.msra.mxu0 0.0
  %722 = vmatprep.subr.mxu0 0.0
  %723 = vmatpush2.msra.mxu0 0.0
  %724 = vmatprep.mubr.f32.mxu0 0.0
  %725 = vmatmul.mubr.f32.gmra.mxu0 %v658
  %v726 = vpop.f32.mrf.mxu0
  %v727 = vadd.f32 0.0, %v726
  %v728 = vpop.f32.mrf.mxu0
  %729 = vdwg.mxu0
  %v731 = vsel %vm656, %v655, 0
  %733 = vmatprep.subr.mxu0 0.0
  %734 = vmatpush1.msra.mxu0 0.0
  %735 = vmatprep.subr.mxu0 0.0
  %736 = vmatpush1.msra.mxu0 0.0
  %737 = vmatprep.subr.mxu0 0.0
  %738 = vmatpush1.msra.mxu0 0.0
  %739 = vmatprep.subr.mxu0 0.0
  %740 = vmatpush1.msra.mxu0 0.0
  %741 = vmatprep.subr.mxu0 0.0
  %742 = vmatpush1.msra.mxu0 0.0
  %743 = vmatprep.subr.mxu0 0.0
  %744 = vmatpush1.msra.mxu0 0.0
  %745 = vmatprep.subr.mxu0 0.0
  %746 = vmatpush1.msra.mxu0 0.0
  %747 = vmatprep.subr.mxu0 0.0
  %748 = vmatpush1.msra.mxu0 0.0
  %749 = vmatprep.subr.mxu0 0.0
  %750 = vmatpush1.msra.mxu0 0.0
  %751 = vmatprep.subr.mxu0 0.0
  %752 = vmatpush1.msra.mxu0 0.0
  %753 = vmatprep.subr.mxu0 0.0
  %754 = vmatpush1.msra.mxu0 0.0
  %755 = vmatprep.subr.mxu0 0.0
  %756 = vmatpush1.msra.mxu0 0.0
  %757 = vmatprep.subr.mxu0 0.0
  %758 = vmatpush1.msra.mxu0 0.0
  %759 = vmatprep.subr.mxu0 0.0
  %760 = vmatpush1.msra.mxu0 0.0
  %761 = vmatprep.subr.mxu0 0.0
  %762 = vmatpush1.msra.mxu0 0.0
  %763 = vmatprep.subr.mxu0 0.0
  %764 = vmatpush1.msra.mxu0 %v59
  %765 = vmatprep.subr.mxu0 0.0
  %766 = vmatpush2.msra.mxu0 0.0
  %767 = vmatprep.subr.mxu0 0.0
  %768 = vmatpush2.msra.mxu0 0.0
  %769 = vmatprep.subr.mxu0 0.0
  %770 = vmatpush2.msra.mxu0 0.0
  %771 = vmatprep.subr.mxu0 0.0
  %772 = vmatpush2.msra.mxu0 0.0
  %773 = vmatprep.subr.mxu0 0.0
  %774 = vmatpush2.msra.mxu0 0.0
  %775 = vmatprep.subr.mxu0 0.0
  %776 = vmatpush2.msra.mxu0 0.0
  %777 = vmatprep.subr.mxu0 0.0
  %778 = vmatpush2.msra.mxu0 0.0
  %779 = vmatprep.subr.mxu0 0.0
  %780 = vmatpush2.msra.mxu0 0.0
  %781 = vmatprep.subr.mxu0 0.0
  %782 = vmatpush2.msra.mxu0 0.0
  %783 = vmatprep.subr.mxu0 0.0
  %784 = vmatpush2.msra.mxu0 0.0
  %785 = vmatprep.subr.mxu0 0.0
  %786 = vmatpush2.msra.mxu0 0.0
  %787 = vmatprep.subr.mxu0 0.0
  %788 = vmatpush2.msra.mxu0 0.0
  %789 = vmatprep.subr.mxu0 0.0
  %790 = vmatpush2.msra.mxu0 0.0
  %791 = vmatprep.subr.mxu0 0.0
  %792 = vmatpush2.msra.mxu0 0.0
  %793 = vmatprep.subr.mxu0 0.0
  %794 = vmatpush2.msra.mxu0 0.0
  %795 = vmatprep.subr.mxu0 0.0
  %796 = vmatpush2.msra.mxu0 0.0
  %797 = vmatprep.mubr.f32.mxu0 0.0
  %798 = vmatmul.mubr.f32.gmra.mxu0 %v731
  %v799 = vpop.f32.mrf.mxu0
  %v800 = vadd.f32 0.0, %v799
  %v801 = vpop.f32.mrf.mxu0
  %802 = vdwg.mxu0
  %v803 = vlaneseq
  %v804 = vshrl.u32 %v803, 7
  %v805 = vsub.s32 0, %v804
  %v806 = vrot.slane %v727, %v805
  %v807 = vmul.f32 %v479, %v806
  %v808 = vmul.f32 %v480, %v806
  %v809 = vmul.f32 %v481, %v806
  %v810 = vmul.f32 %v482, %v806
  %v811 = vlaneseq
  %v812 = vshrl.u32 %v811, 7
  %v813 = vsub.s32 0, %v812
  %v814 = vrot.slane %v800, %v813
  %v815 = vadd.f32 %v807, %v814
  %v816 = vadd.f32 %v808, %v814
  %v817 = vadd.f32 %v809, %v814
  %v818 = vadd.f32 %v810, %v814
  %v819 = vmax.f32 %v815, 0.0
  %v820 = vmax.f32 %v816, 0.0
  %v821 = vmax.f32 %v817, 0.0
  %v822 = vmax.f32 %v818, 0.0
  %v823 = vpack.c.bf16 %v820, %v819
  %v824 = vpack.c.bf16 %v822, %v821
  %v825 = vld [vmem:[%s2] sm:$0xf]
  %v826 = vld [vmem:[%s2 + $0x4] sm:$0xf]
  %v827 = vld [vmem:[%s2 + $0x8] sm:$0xf]
  %v828 = vld [vmem:[%s2 + $0xc] sm:$0xf]
  %v829 = vld [vmem:[%s2 + $0x10] sm:$0xf]
  %v830 = vld [vmem:[%s2 + $0x14] sm:$0xf]
  %v831 = vld [vmem:[%s2 + $0x18] sm:$0xf]
  %v832 = vld [vmem:[%s2 + $0x1c] sm:$0xf]
  %v833 = vld [vmem:[%s2 + $0x20] sm:$0xf]
  %v834 = vld [vmem:[%s2 + $0x24] sm:$0xf]
  %v835 = vld [vmem:[%s2 + $0x28] sm:$0xf]
  %v836 = vld [vmem:[%s2 + $0x2c] sm:$0xf]
  %v837 = vld [vmem:[%s2 + $0x30] sm:$0xf]
  %v838 = vld [vmem:[%s2 + $0x34] sm:$0xf]
  %v839 = vld [vmem:[%s2 + $0x38] sm:$0xf]
  %v840 = vld [vmem:[%s2 + $0x3c] sm:$0xf]
  %v857 = vunpack.c.l.b16 %v825
  %v858 = vunpack.c.l.b16 %v826
  %v859 = vunpack.c.l.b16 %v827
  %v860 = vunpack.c.l.b16 %v828
  %v861 = vunpack.c.l.b16 %v829
  %v862 = vunpack.c.l.b16 %v830
  %v863 = vunpack.c.l.b16 %v831
  %v864 = vunpack.c.l.b16 %v832
  %v865 = vunpack.c.l.b16 %v833
  %v866 = vunpack.c.l.b16 %v834
  %v867 = vunpack.c.l.b16 %v835
  %v868 = vunpack.c.l.b16 %v836
  %v869 = vunpack.c.l.b16 %v837
  %v870 = vunpack.c.l.b16 %v838
  %v871 = vunpack.c.l.b16 %v839
  %v872 = vunpack.c.l.b16 %v840
  %v873 = vpack.c.b16 %v858, %v857
  %v874 = vpack.c.b16 %v860, %v859
  %v875 = vpack.c.b16 %v862, %v861
  %v876 = vpack.c.b16 %v864, %v863
  %v877 = vpack.c.b16 %v866, %v865
  %v878 = vpack.c.b16 %v868, %v867
  %v879 = vpack.c.b16 %v870, %v869
  %v880 = vpack.c.b16 %v872, %v871
  %889 = vmatprep.subr.bf16.mxu0 0
  %890 = vmatpush1.bf16.msra.mxu0 %v880
  %891 = vmatprep.subr.bf16.mxu0 0
  %892 = vmatpush1.bf16.msra.mxu0 %v879
  %893 = vmatprep.subr.bf16.mxu0 0
  %894 = vmatpush1.bf16.msra.mxu0 %v878
  %895 = vmatprep.subr.bf16.mxu0 0
  %896 = vmatpush1.bf16.msra.mxu0 %v877
  %897 = vmatprep.subr.bf16.mxu0 0
  %898 = vmatpush1.bf16.msra.mxu0 %v876
  %899 = vmatprep.subr.bf16.mxu0 0
  %900 = vmatpush1.bf16.msra.mxu0 %v875
  %901 = vmatprep.subr.bf16.mxu0 0
  %902 = vmatpush1.bf16.msra.mxu0 %v874
  %903 = vmatprep.subr.bf16.mxu0 0
  %904 = vmatpush1.bf16.msra.mxu0 %v873
  %905 = vmatprep.subr.bf16.mxu0 0
  %906 = vmatpush2.bf16.msra.mxu0 0
  %907 = vmatprep.subr.bf16.mxu0 0
  %908 = vmatpush2.bf16.msra.mxu0 0
  %909 = vmatprep.subr.bf16.mxu0 0
  %910 = vmatpush2.bf16.msra.mxu0 0
  %911 = vmatprep.subr.bf16.mxu0 0
  %912 = vmatpush2.bf16.msra.mxu0 0
  %913 = vmatprep.subr.bf16.mxu0 0
  %914 = vmatpush2.bf16.msra.mxu0 0
  %915 = vmatprep.subr.bf16.mxu0 0
  %916 = vmatpush2.bf16.msra.mxu0 0
  %917 = vmatprep.subr.bf16.mxu0 0
  %918 = vmatpush2.bf16.msra.mxu0 0
  %919 = vmatprep.subr.bf16.mxu0 0
  %920 = vmatpush2.bf16.msra.mxu0 0
  %921 = vmatprep.mubr.bf16.mxu0 0
  %922 = vmatmul.mubr.bf16.gmra.mxu0 %v823
  %v923 = vpop.f32.mrf.mxu0
  %v924 = vadd.f32 0.0, %v923
  %v925 = vpop.f32.mrf.mxu0
  %v926 = vpop.f32.mrf.mxu0
  %v927 = vadd.f32 0.0, %v926
  %v928 = vpop.f32.mrf.mxu0
  %929 = vmatprep.mubr.bf16.mxu0 0
  %930 = vmatmul.mubr.bf16.gmra.mxu0 %v824
  %v931 = vpop.f32.mrf.mxu0
  %v932 = vadd.f32 0.0, %v931
  %v933 = vpop.f32.mrf.mxu0
  %v934 = vpop.f32.mrf.mxu0
  %v935 = vadd.f32 0.0, %v934
  %v936 = vpop.f32.mrf.mxu0
  %937 = vdwg.mxu0
  %s938 = scalar_lea.vmem %s2, 64
  %v939 = vld [vmem:[%s938] sm:$0xf]
  %v940 = vld [vmem:[%s938 + $0x4] sm:$0xf]
  %v941 = vld [vmem:[%s938 + $0x8] sm:$0xf]
  %v942 = vld [vmem:[%s938 + $0xc] sm:$0xf]
  %v943 = vld [vmem:[%s938 + $0x10] sm:$0xf]
  %v944 = vld [vmem:[%s938 + $0x14] sm:$0xf]
  %v945 = vld [vmem:[%s938 + $0x18] sm:$0xf]
  %v946 = vld [vmem:[%s938 + $0x1c] sm:$0xf]
  %v947 = vld [vmem:[%s938 + $0x20] sm:$0xf]
  %v948 = vld [vmem:[%s938 + $0x24] sm:$0xf]
  %v949 = vld [vmem:[%s938 + $0x28] sm:$0xf]
  %v950 = vld [vmem:[%s938 + $0x2c] sm:$0xf]
  %v951 = vld [vmem:[%s938 + $0x30] sm:$0xf]
  %v952 = vld [vmem:[%s938 + $0x34] sm:$0xf]
  %v953 = vld [vmem:[%s938 + $0x38] sm:$0xf]
  %v954 = vld [vmem:[%s938 + $0x3c] sm:$0xf]
  %s955 = scalar_lea.vmem %s2, 128
  %v956 = vld [vmem:[%s955] sm:$0xf]
  %v957 = vld [vmem:[%s955 + $0x4] sm:$0xf]
  %v958 = vld [vmem:[%s955 + $0x8] sm:$0xf]
  %v959 = vld [vmem:[%s955 + $0xc] sm:$0xf]
  %v960 = vld [vmem:[%s955 + $0x10] sm:$0xf]
  %v961 = vld [vmem:[%s955 + $0x14] sm:$0xf]
  %v962 = vld [vmem:[%s955 + $0x18] sm:$0xf]
  %v963 = vld [vmem:[%s955 + $0x1c] sm:$0xf]
  %v964 = vld [vmem:[%s955 + $0x20] sm:$0xf]
  %v965 = vld [vmem:[%s955 + $0x24] sm:$0xf]
  %v966 = vld [vmem:[%s955 + $0x28] sm:$0xf]
  %v967 = vld [vmem:[%s955 + $0x2c] sm:$0xf]
  %v968 = vld [vmem:[%s955 + $0x30] sm:$0xf]
  %v969 = vld [vmem:[%s955 + $0x34] sm:$0xf]
  %v970 = vld [vmem:[%s955 + $0x38] sm:$0xf]
  %v971 = vld [vmem:[%s955 + $0x3c] sm:$0xf]
  %v988 = vunpack.c.l.b16 %v956
  %v989 = vunpack.c.l.b16 %v957
  %v990 = vunpack.c.l.b16 %v958
  %v991 = vunpack.c.l.b16 %v959
  %v992 = vunpack.c.l.b16 %v960
  %v993 = vunpack.c.l.b16 %v961
  %v994 = vunpack.c.l.b16 %v962
  %v995 = vunpack.c.l.b16 %v963
  %v996 = vunpack.c.l.b16 %v964
  %v997 = vunpack.c.l.b16 %v965
  %v998 = vunpack.c.l.b16 %v966
  %v999 = vunpack.c.l.b16 %v967
  %v1000 = vunpack.c.l.b16 %v968
  %v1001 = vunpack.c.l.b16 %v969
  %v1002 = vunpack.c.l.b16 %v970
  %v1003 = vunpack.c.l.b16 %v971
  %v1004 = vpack.c.b16 %v989, %v988
  %v1005 = vpack.c.b16 %v991, %v990
  %v1006 = vpack.c.b16 %v993, %v992
  %v1007 = vpack.c.b16 %v995, %v994
  %v1008 = vpack.c.b16 %v997, %v996
  %v1009 = vpack.c.b16 %v999, %v998
  %v1010 = vpack.c.b16 %v1001, %v1000
  %v1011 = vpack.c.b16 %v1003, %v1002
  %1020 = vmatprep.subr.bf16.mxu0 0
  %1021 = vmatpush1.bf16.msra.mxu0 %v1011
  %1022 = vmatprep.subr.bf16.mxu0 0
  %1023 = vmatpush1.bf16.msra.mxu0 %v1010
  %1024 = vmatprep.subr.bf16.mxu0 0
  %1025 = vmatpush1.bf16.msra.mxu0 %v1009
  %1026 = vmatprep.subr.bf16.mxu0 0
  %1027 = vmatpush1.bf16.msra.mxu0 %v1008
  %1028 = vmatprep.subr.bf16.mxu0 0
  %1029 = vmatpush1.bf16.msra.mxu0 %v1007
  %1030 = vmatprep.subr.bf16.mxu0 0
  %1031 = vmatpush1.bf16.msra.mxu0 %v1006
  %1032 = vmatprep.subr.bf16.mxu0 0
  %1033 = vmatpush1.bf16.msra.mxu0 %v1005
  %1034 = vmatprep.subr.bf16.mxu0 0
  %1035 = vmatpush1.bf16.msra.mxu0 %v1004
  %1036 = vmatprep.subr.bf16.mxu0 0
  %1037 = vmatpush2.bf16.msra.mxu0 0
  %1038 = vmatprep.subr.bf16.mxu0 0
  %1039 = vmatpush2.bf16.msra.mxu0 0
  %1040 = vmatprep.subr.bf16.mxu0 0
  %1041 = vmatpush2.bf16.msra.mxu0 0
  %1042 = vmatprep.subr.bf16.mxu0 0
  %1043 = vmatpush2.bf16.msra.mxu0 0
  %1044 = vmatprep.subr.bf16.mxu0 0
  %1045 = vmatpush2.bf16.msra.mxu0 0
  %1046 = vmatprep.subr.bf16.mxu0 0
  %1047 = vmatpush2.bf16.msra.mxu0 0
  %1048 = vmatprep.subr.bf16.mxu0 0
  %1049 = vmatpush2.bf16.msra.mxu0 0
  %1050 = vmatprep.subr.bf16.mxu0 0
  %1051 = vmatpush2.bf16.msra.mxu0 0
  %1052 = vmatprep.mubr.bf16.mxu0 0
  %1053 = vmatmul.mubr.bf16.gmra.mxu0 %v823
  %v1054 = vpop.f32.mrf.mxu0
  %v1055 = vadd.f32 0.0, %v1054
  %v1056 = vpop.f32.mrf.mxu0
  %v1057 = vpop.f32.mrf.mxu0
  %v1058 = vadd.f32 0.0, %v1057
  %v1059 = vpop.f32.mrf.mxu0
  %1060 = vmatprep.mubr.bf16.mxu0 0
  %1061 = vmatmul.mubr.bf16.gmra.mxu0 %v824
  %v1062 = vpop.f32.mrf.mxu0
  %v1063 = vadd.f32 0.0, %v1062
  %v1064 = vpop.f32.mrf.mxu0
  %v1065 = vpop.f32.mrf.mxu0
  %v1066 = vadd.f32 0.0, %v1065
  %v1067 = vpop.f32.mrf.mxu0
  %1068 = vdwg.mxu0
  %v1069 = vrot.slane %v924, 7
  %v1070 = vrot.slane %v927, 7
  %v1071 = vrot.slane %v932, 7
  %v1072 = vrot.slane %v935, 7
  %v1073 = vsel %vm320, %v1071, %v1072
  %v1074 = vsel %vm320, %v1070, %v1071
  %v1075 = vsel %vm320, %v1069, %v1070
  %v1076 = vsel %vm320, %v1072, %v1069
  %v1077 = vmul.f32 %v328, %v1076
  %v1078 = vmul.f32 %v333, %v1075
  %v1079 = vmul.f32 %v338, %v1074
  %v1080 = vmul.f32 %v343, %v1073
  %v1097 = vunpack.c.l.b16 %v939
  %v1098 = vunpack.c.l.b16 %v940
  %v1099 = vunpack.c.l.b16 %v941
  %v1100 = vunpack.c.l.b16 %v942
  %v1101 = vunpack.c.l.b16 %v943
  %v1102 = vunpack.c.l.b16 %v944
  %v1103 = vunpack.c.l.b16 %v945
  %v1104 = vunpack.c.l.b16 %v946
  %v1105 = vunpack.c.l.b16 %v947
  %v1106 = vunpack.c.l.b16 %v948
  %v1107 = vunpack.c.l.b16 %v949
  %v1108 = vunpack.c.l.b16 %v950
  %v1109 = vunpack.c.l.b16 %v951
  %v1110 = vunpack.c.l.b16 %v952
  %v1111 = vunpack.c.l.b16 %v953
  %v1112 = vunpack.c.l.b16 %v954
  %v1113 = vpack.c.b16 %v1098, %v1097
  %v1114 = vpack.c.b16 %v1100, %v1099
  %v1115 = vpack.c.b16 %v1102, %v1101
  %v1116 = vpack.c.b16 %v1104, %v1103
  %v1117 = vpack.c.b16 %v1106, %v1105
  %v1118 = vpack.c.b16 %v1108, %v1107
  %v1119 = vpack.c.b16 %v1110, %v1109
  %v1120 = vpack.c.b16 %v1112, %v1111
  %1129 = vmatprep.subr.bf16.mxu0 0
  %1130 = vmatpush1.bf16.msra.mxu0 %v1120
  %1131 = vmatprep.subr.bf16.mxu0 0
  %1132 = vmatpush1.bf16.msra.mxu0 %v1119
  %1133 = vmatprep.subr.bf16.mxu0 0
  %1134 = vmatpush1.bf16.msra.mxu0 %v1118
  %1135 = vmatprep.subr.bf16.mxu0 0
  %1136 = vmatpush1.bf16.msra.mxu0 %v1117
  %1137 = vmatprep.subr.bf16.mxu0 0
  %1138 = vmatpush1.bf16.msra.mxu0 %v1116
  %1139 = vmatprep.subr.bf16.mxu0 0
  %1140 = vmatpush1.bf16.msra.mxu0 %v1115
  %1141 = vmatprep.subr.bf16.mxu0 0
  %1142 = vmatpush1.bf16.msra.mxu0 %v1114
  %1143 = vmatprep.subr.bf16.mxu0 0
  %1144 = vmatpush1.bf16.msra.mxu0 %v1113
  %1145 = vmatprep.subr.bf16.mxu0 0
  %1146 = vmatpush2.bf16.msra.mxu0 0
  %1147 = vmatprep.subr.bf16.mxu0 0
  %1148 = vmatpush2.bf16.msra.mxu0 0
  %1149 = vmatprep.subr.bf16.mxu0 0
  %1150 = vmatpush2.bf16.msra.mxu0 0
  %1151 = vmatprep.subr.bf16.mxu0 0
  %1152 = vmatpush2.bf16.msra.mxu0 0
  %1153 = vmatprep.subr.bf16.mxu0 0
  %1154 = vmatpush2.bf16.msra.mxu0 0
  %1155 = vmatprep.subr.bf16.mxu0 0
  %1156 = vmatpush2.bf16.msra.mxu0 0
  %1157 = vmatprep.subr.bf16.mxu0 0
  %1158 = vmatpush2.bf16.msra.mxu0 0
  %1159 = vmatprep.subr.bf16.mxu0 0
  %1160 = vmatpush2.bf16.msra.mxu0 0
  %1161 = vmatprep.mubr.bf16.mxu0 0
  %1162 = vmatmul.mubr.bf16.gmra.mxu0 %v823
  %v1163 = vpop.f32.mrf.mxu0
  %v1164 = vadd.f32 %v1077, %v1163
  %v1165 = vpop.f32.mrf.mxu0
  %v1166 = vpop.f32.mrf.mxu0
  %v1167 = vadd.f32 %v1078, %v1166
  %v1168 = vpop.f32.mrf.mxu0
  %1169 = vmatprep.mubr.bf16.mxu0 0
  %1170 = vmatmul.mubr.bf16.gmra.mxu0 %v824
  %v1171 = vpop.f32.mrf.mxu0
  %v1172 = vadd.f32 %v1079, %v1171
  %v1173 = vpop.f32.mrf.mxu0
  %v1174 = vpop.f32.mrf.mxu0
  %v1175 = vadd.f32 %v1080, %v1174
  %v1176 = vpop.f32.mrf.mxu0
  %1177 = vdwg.mxu0
  %v1178 = vrot.slane %v1055, 1
  %v1179 = vrot.slane %v1058, 1
  %v1180 = vrot.slane %v1063, 1
  %v1181 = vrot.slane %v1066, 1
  %v1182 = vsel %vm450, %v1180, %v1181
  %v1183 = vsel %vm450, %v1179, %v1180
  %v1184 = vsel %vm450, %v1178, %v1179
  %v1185 = vsel %vm450, %v1181, %v1178
  %v1186 = vmul.f32 %v458, %v1184
  %v1187 = vmul.f32 %v463, %v1183
  %v1188 = vmul.f32 %v468, %v1182
  %v1189 = vmul.f32 %v473, %v1185
  %v1190 = vadd.f32 %v1164, %v1186
  %v1191 = vadd.f32 %v1167, %v1187
  %v1192 = vadd.f32 %v1172, %v1188
  %v1193 = vadd.f32 %v1175, %v1189
  %v1194 = vld [vmem:[%s5] sm:$0x1]
  %v1195 = vld [vmem:[%s6] sm:$0x1]
  %v1196 = vadd.f32 %v1190, %v1191
  %v1197 = vadd.f32 %v1196, %v1192
  %v1198 = vadd.f32 %v1197, %v1193
  %v1199 = vrot.slane %v1198, 4
  %v1200 = vadd.f32 %v1198, %v1199
  %v1201 = vrot.slane %v1200, 2
  %v1202 = vadd.f32 %v1200, %v1201
  %v1203 = vrot.slane %v1202, 1
  %v1204 = vadd.f32 %v1202, %v1203
  %v1205 = vmul.f32 %v1190, %v1190
  %v1206 = vmul.f32 %v1191, %v1191
  %v1207 = vmul.f32 %v1192, %v1192
  %v1208 = vmul.f32 %v1193, %v1193
  %v1209 = vadd.f32 %v1205, %v1206
  %v1210 = vadd.f32 %v1209, %v1207
  %v1211 = vadd.f32 %v1210, %v1208
  %v1212 = vrot.slane %v1211, 4
  %v1213 = vadd.f32 %v1211, %v1212
  %v1214 = vrot.slane %v1213, 2
  %v1215 = vadd.f32 %v1213, %v1214
  %v1216 = vrot.slane %v1215, 1
  %v1217 = vadd.f32 %v1215, %v1216
  %1218 = vmatprep.subr.mxu0 0.0
  %1219 = vmatpush1.msra.mxu0 %v58
  %1220 = vmatprep.subr.mxu0 0.0
  %1221 = vmatpush1.msra.mxu0 %v57
  %1222 = vmatprep.subr.mxu0 0.0
  %1223 = vmatpush1.msra.mxu0 %v56
  %1224 = vmatprep.subr.mxu0 0.0
  %1225 = vmatpush1.msra.mxu0 %v55
  %1226 = vmatprep.subr.mxu0 0.0
  %1227 = vmatpush1.msra.mxu0 %v54
  %1228 = vmatprep.subr.mxu0 0.0
  %1229 = vmatpush1.msra.mxu0 %v53
  %1230 = vmatprep.subr.mxu0 0.0
  %1231 = vmatpush1.msra.mxu0 %v52
  %1232 = vmatprep.subr.mxu0 0.0
  %1233 = vmatpush1.msra.mxu0 %v51
  %1234 = vmatprep.subr.mxu0 0.0
  %1235 = vmatpush1.msra.mxu0 %v50
  %1236 = vmatprep.subr.mxu0 0.0
  %1237 = vmatpush1.msra.mxu0 %v49
  %1238 = vmatprep.subr.mxu0 0.0
  %1239 = vmatpush1.msra.mxu0 %v48
  %1240 = vmatprep.subr.mxu0 0.0
  %1241 = vmatpush1.msra.mxu0 %v47
  %1242 = vmatprep.subr.mxu0 0.0
  %1243 = vmatpush1.msra.mxu0 %v46
  %1244 = vmatprep.subr.mxu0 0.0
  %1245 = vmatpush1.msra.mxu0 %v45
  %1246 = vmatprep.subr.mxu0 0.0
  %1247 = vmatpush1.msra.mxu0 %v44
  %1248 = vmatprep.subr.mxu0 0.0
  %1249 = vmatpush1.msra.mxu0 %v43
  %1250 = vmatprep.subr.mxu0 0.0
  %1251 = vmatpush2.msra.mxu0 0.0
  %1252 = vmatprep.subr.mxu0 0.0
  %1253 = vmatpush2.msra.mxu0 0.0
  %1254 = vmatprep.subr.mxu0 0.0
  %1255 = vmatpush2.msra.mxu0 0.0
  %1256 = vmatprep.subr.mxu0 0.0
  %1257 = vmatpush2.msra.mxu0 0.0
  %1258 = vmatprep.subr.mxu0 0.0
  %1259 = vmatpush2.msra.mxu0 0.0
  %1260 = vmatprep.subr.mxu0 0.0
  %1261 = vmatpush2.msra.mxu0 0.0
  %1262 = vmatprep.subr.mxu0 0.0
  %1263 = vmatpush2.msra.mxu0 0.0
  %1264 = vmatprep.subr.mxu0 0.0
  %1265 = vmatpush2.msra.mxu0 0.0
  %1266 = vmatprep.subr.mxu0 0.0
  %1267 = vmatpush2.msra.mxu0 0.0
  %1268 = vmatprep.subr.mxu0 0.0
  %1269 = vmatpush2.msra.mxu0 0.0
  %1270 = vmatprep.subr.mxu0 0.0
  %1271 = vmatpush2.msra.mxu0 0.0
  %1272 = vmatprep.subr.mxu0 0.0
  %1273 = vmatpush2.msra.mxu0 0.0
  %1274 = vmatprep.subr.mxu0 0.0
  %1275 = vmatpush2.msra.mxu0 0.0
  %1276 = vmatprep.subr.mxu0 0.0
  %1277 = vmatpush2.msra.mxu0 0.0
  %1278 = vmatprep.subr.mxu0 0.0
  %1279 = vmatpush2.msra.mxu0 0.0
  %1280 = vmatprep.subr.mxu0 0.0
  %1281 = vmatpush2.msra.mxu0 0.0
  %1282 = vmatprep.mubr.f32.mxu0 0.0
  %1283 = vmatmul.mubr.f32.gmra.mxu0 %v1204
  %v1284 = vpop.f32.mrf.mxu0
  %v1285 = vadd.f32 0.0, %v1284
  %v1286 = vpop.f32.mrf.mxu0
  %1287 = vdwg.mxu0
  %v1288 = vmul.f32 %v1285, 0.001953125
  %1289 = vmatprep.subr.mxu0 0.0
  %1290 = vmatpush1.msra.mxu0 %v58
  %1291 = vmatprep.subr.mxu0 0.0
  %1292 = vmatpush1.msra.mxu0 %v57
  %1293 = vmatprep.subr.mxu0 0.0
  %1294 = vmatpush1.msra.mxu0 %v56
  %1295 = vmatprep.subr.mxu0 0.0
  %1296 = vmatpush1.msra.mxu0 %v55
  %1297 = vmatprep.subr.mxu0 0.0
  %1298 = vmatpush1.msra.mxu0 %v54
  %1299 = vmatprep.subr.mxu0 0.0
  %1300 = vmatpush1.msra.mxu0 %v53
  %1301 = vmatprep.subr.mxu0 0.0
  %1302 = vmatpush1.msra.mxu0 %v52
  %1303 = vmatprep.subr.mxu0 0.0
  %1304 = vmatpush1.msra.mxu0 %v51
  %1305 = vmatprep.subr.mxu0 0.0
  %1306 = vmatpush1.msra.mxu0 %v50
  %1307 = vmatprep.subr.mxu0 0.0
  %1308 = vmatpush1.msra.mxu0 %v49
  %1309 = vmatprep.subr.mxu0 0.0
  %1310 = vmatpush1.msra.mxu0 %v48
  %1311 = vmatprep.subr.mxu0 0.0
  %1312 = vmatpush1.msra.mxu0 %v47
  %1313 = vmatprep.subr.mxu0 0.0
  %1314 = vmatpush1.msra.mxu0 %v46
  %1315 = vmatprep.subr.mxu0 0.0
  %1316 = vmatpush1.msra.mxu0 %v45
  %1317 = vmatprep.subr.mxu0 0.0
  %1318 = vmatpush1.msra.mxu0 %v44
  %1319 = vmatprep.subr.mxu0 0.0
  %1320 = vmatpush1.msra.mxu0 %v43
  %1321 = vmatprep.subr.mxu0 0.0
  %1322 = vmatpush2.msra.mxu0 0.0
  %1323 = vmatprep.subr.mxu0 0.0
  %1324 = vmatpush2.msra.mxu0 0.0
  %1325 = vmatprep.subr.mxu0 0.0
  %1326 = vmatpush2.msra.mxu0 0.0
  %1327 = vmatprep.subr.mxu0 0.0
  %1328 = vmatpush2.msra.mxu0 0.0
  %1329 = vmatprep.subr.mxu0 0.0
  %1330 = vmatpush2.msra.mxu0 0.0
  %1331 = vmatprep.subr.mxu0 0.0
  %1332 = vmatpush2.msra.mxu0 0.0
  %1333 = vmatprep.subr.mxu0 0.0
  %1334 = vmatpush2.msra.mxu0 0.0
  %1335 = vmatprep.subr.mxu0 0.0
  %1336 = vmatpush2.msra.mxu0 0.0
  %1337 = vmatprep.subr.mxu0 0.0
  %1338 = vmatpush2.msra.mxu0 0.0
  %1339 = vmatprep.subr.mxu0 0.0
  %1340 = vmatpush2.msra.mxu0 0.0
  %1341 = vmatprep.subr.mxu0 0.0
  %1342 = vmatpush2.msra.mxu0 0.0
  %1343 = vmatprep.subr.mxu0 0.0
  %1344 = vmatpush2.msra.mxu0 0.0
  %1345 = vmatprep.subr.mxu0 0.0
  %1346 = vmatpush2.msra.mxu0 0.0
  %1347 = vmatprep.subr.mxu0 0.0
  %1348 = vmatpush2.msra.mxu0 0.0
  %1349 = vmatprep.subr.mxu0 0.0
  %1350 = vmatpush2.msra.mxu0 0.0
  %1351 = vmatprep.subr.mxu0 0.0
  %1352 = vmatpush2.msra.mxu0 0.0
  %1353 = vmatprep.mubr.f32.mxu0 0.0
  %1354 = vmatmul.mubr.f32.gmra.mxu0 %v1217
  %v1355 = vpop.f32.mrf.mxu0
  %v1356 = vadd.f32 0.0, %v1355
  %v1357 = vpop.f32.mrf.mxu0
  %1358 = vdwg.mxu0
  %v1359 = vmul.f32 %v1356, 0.001953125
  %v1360 = vmul.f32 %v1288, %v1288
  %v1361 = vsub.f32 %v1359, %v1360
  %v1362 = vadd.f32 %v1361, 1e-05
  %v1363 = vrsqrt.pop %v1362
  %v1364 = vmul.f32 %v1194, %v1363
  %v1365 = vmul.f32 %v1288, %v1364
  %v1366 = vsub.f32 %v1195, %v1365
  %v1368 = vsel %vm656, %v1364, 0
  %1370 = vmatprep.subr.mxu0 0.0
  %1371 = vmatpush1.msra.mxu0 0.0
  %1372 = vmatprep.subr.mxu0 0.0
  %1373 = vmatpush1.msra.mxu0 0.0
  %1374 = vmatprep.subr.mxu0 0.0
  %1375 = vmatpush1.msra.mxu0 0.0
  %1376 = vmatprep.subr.mxu0 0.0
  %1377 = vmatpush1.msra.mxu0 0.0
  %1378 = vmatprep.subr.mxu0 0.0
  %1379 = vmatpush1.msra.mxu0 0.0
  %1380 = vmatprep.subr.mxu0 0.0
  %1381 = vmatpush1.msra.mxu0 0.0
  %1382 = vmatprep.subr.mxu0 0.0
  %1383 = vmatpush1.msra.mxu0 0.0
  %1384 = vmatprep.subr.mxu0 0.0
  %1385 = vmatpush1.msra.mxu0 0.0
  %1386 = vmatprep.subr.mxu0 0.0
  %1387 = vmatpush1.msra.mxu0 0.0
  %1388 = vmatprep.subr.mxu0 0.0
  %1389 = vmatpush1.msra.mxu0 0.0
  %1390 = vmatprep.subr.mxu0 0.0
  %1391 = vmatpush1.msra.mxu0 0.0
  %1392 = vmatprep.subr.mxu0 0.0
  %1393 = vmatpush1.msra.mxu0 0.0
  %1394 = vmatprep.subr.mxu0 0.0
  %1395 = vmatpush1.msra.mxu0 0.0
  %1396 = vmatprep.subr.mxu0 0.0
  %1397 = vmatpush1.msra.mxu0 0.0
  %1398 = vmatprep.subr.mxu0 0.0
  %1399 = vmatpush1.msra.mxu0 0.0
  %1400 = vmatprep.subr.mxu0 0.0
  %1401 = vmatpush1.msra.mxu0 %v59
  %1402 = vmatprep.subr.mxu0 0.0
  %1403 = vmatpush2.msra.mxu0 0.0
  %1404 = vmatprep.subr.mxu0 0.0
  %1405 = vmatpush2.msra.mxu0 0.0
  %1406 = vmatprep.subr.mxu0 0.0
  %1407 = vmatpush2.msra.mxu0 0.0
  %1408 = vmatprep.subr.mxu0 0.0
  %1409 = vmatpush2.msra.mxu0 0.0
  %1410 = vmatprep.subr.mxu0 0.0
  %1411 = vmatpush2.msra.mxu0 0.0
  %1412 = vmatprep.subr.mxu0 0.0
  %1413 = vmatpush2.msra.mxu0 0.0
  %1414 = vmatprep.subr.mxu0 0.0
  %1415 = vmatpush2.msra.mxu0 0.0
  %1416 = vmatprep.subr.mxu0 0.0
  %1417 = vmatpush2.msra.mxu0 0.0
  %1418 = vmatprep.subr.mxu0 0.0
  %1419 = vmatpush2.msra.mxu0 0.0
  %1420 = vmatprep.subr.mxu0 0.0
  %1421 = vmatpush2.msra.mxu0 0.0
  %1422 = vmatprep.subr.mxu0 0.0
  %1423 = vmatpush2.msra.mxu0 0.0
  %1424 = vmatprep.subr.mxu0 0.0
  %1425 = vmatpush2.msra.mxu0 0.0
  %1426 = vmatprep.subr.mxu0 0.0
  %1427 = vmatpush2.msra.mxu0 0.0
  %1428 = vmatprep.subr.mxu0 0.0
  %1429 = vmatpush2.msra.mxu0 0.0
  %1430 = vmatprep.subr.mxu0 0.0
  %1431 = vmatpush2.msra.mxu0 0.0
  %1432 = vmatprep.subr.mxu0 0.0
  %1433 = vmatpush2.msra.mxu0 0.0
  %1434 = vmatprep.mubr.f32.mxu0 0.0
  %1435 = vmatmul.mubr.f32.gmra.mxu0 %v1368
  %v1436 = vpop.f32.mrf.mxu0
  %v1437 = vadd.f32 0.0, %v1436
  %v1438 = vpop.f32.mrf.mxu0
  %1439 = vdwg.mxu0
  %v1441 = vsel %vm656, %v1366, 0
  %1443 = vmatprep.subr.mxu0 0.0
  %1444 = vmatpush1.msra.mxu0 0.0
  %1445 = vmatprep.subr.mxu0 0.0
  %1446 = vmatpush1.msra.mxu0 0.0
  %1447 = vmatprep.subr.mxu0 0.0
  %1448 = vmatpush1.msra.mxu0 0.0
  %1449 = vmatprep.subr.mxu0 0.0
  %1450 = vmatpush1.msra.mxu0 0.0
  %1451 = vmatprep.subr.mxu0 0.0
  %1452 = vmatpush1.msra.mxu0 0.0
  %1453 = vmatprep.subr.mxu0 0.0
  %1454 = vmatpush1.msra.mxu0 0.0
  %1455 = vmatprep.subr.mxu0 0.0
  %1456 = vmatpush1.msra.mxu0 0.0
  %1457 = vmatprep.subr.mxu0 0.0
  %1458 = vmatpush1.msra.mxu0 0.0
  %1459 = vmatprep.subr.mxu0 0.0
  %1460 = vmatpush1.msra.mxu0 0.0
  %1461 = vmatprep.subr.mxu0 0.0
  %1462 = vmatpush1.msra.mxu0 0.0
  %1463 = vmatprep.subr.mxu0 0.0
  %1464 = vmatpush1.msra.mxu0 0.0
  %1465 = vmatprep.subr.mxu0 0.0
  %1466 = vmatpush1.msra.mxu0 0.0
  %1467 = vmatprep.subr.mxu0 0.0
  %1468 = vmatpush1.msra.mxu0 0.0
  %1469 = vmatprep.subr.mxu0 0.0
  %1470 = vmatpush1.msra.mxu0 0.0
  %1471 = vmatprep.subr.mxu0 0.0
  %1472 = vmatpush1.msra.mxu0 0.0
  %1473 = vmatprep.subr.mxu0 0.0
  %1474 = vmatpush1.msra.mxu0 %v59
  %1475 = vmatprep.subr.mxu0 0.0
  %1476 = vmatpush2.msra.mxu0 0.0
  %1477 = vmatprep.subr.mxu0 0.0
  %1478 = vmatpush2.msra.mxu0 0.0
  %1479 = vmatprep.subr.mxu0 0.0
  %1480 = vmatpush2.msra.mxu0 0.0
  %1481 = vmatprep.subr.mxu0 0.0
  %1482 = vmatpush2.msra.mxu0 0.0
  %1483 = vmatprep.subr.mxu0 0.0
  %1484 = vmatpush2.msra.mxu0 0.0
  %1485 = vmatprep.subr.mxu0 0.0
  %1486 = vmatpush2.msra.mxu0 0.0
  %1487 = vmatprep.subr.mxu0 0.0
  %1488 = vmatpush2.msra.mxu0 0.0
  %1489 = vmatprep.subr.mxu0 0.0
  %1490 = vmatpush2.msra.mxu0 0.0
  %1491 = vmatprep.subr.mxu0 0.0
  %1492 = vmatpush2.msra.mxu0 0.0
  %1493 = vmatprep.subr.mxu0 0.0
  %1494 = vmatpush2.msra.mxu0 0.0
  %1495 = vmatprep.subr.mxu0 0.0
  %1496 = vmatpush2.msra.mxu0 0.0
  %1497 = vmatprep.subr.mxu0 0.0
  %1498 = vmatpush2.msra.mxu0 0.0
  %1499 = vmatprep.subr.mxu0 0.0
  %1500 = vmatpush2.msra.mxu0 0.0
  %1501 = vmatprep.subr.mxu0 0.0
  %1502 = vmatpush2.msra.mxu0 0.0
  %1503 = vmatprep.subr.mxu0 0.0
  %1504 = vmatpush2.msra.mxu0 0.0
  %1505 = vmatprep.subr.mxu0 0.0
  %1506 = vmatpush2.msra.mxu0 0.0
  %1507 = vmatprep.mubr.f32.mxu0 0.0
  %1508 = vmatmul.mubr.f32.gmra.mxu0 %v1441
  %v1509 = vpop.f32.mrf.mxu0
  %v1510 = vadd.f32 0.0, %v1509
  %v1511 = vpop.f32.mrf.mxu0
  %1512 = vdwg.mxu0
  %v1513 = vlaneseq
  %v1514 = vshrl.u32 %v1513, 7
  %v1515 = vsub.s32 0, %v1514
  %v1516 = vrot.slane %v1437, %v1515
  %v1517 = vmul.f32 %v1190, %v1516
  %v1518 = vmul.f32 %v1191, %v1516
  %v1519 = vmul.f32 %v1192, %v1516
  %v1520 = vmul.f32 %v1193, %v1516
  %v1521 = vlaneseq
  %v1522 = vshrl.u32 %v1521, 7
  %v1523 = vsub.s32 0, %v1522
  %v1524 = vrot.slane %v1510, %v1523
  %v1525 = vadd.f32 %v1517, %v1524
  %v1526 = vadd.f32 %v1518, %v1524
  %v1527 = vadd.f32 %v1519, %v1524
  %v1528 = vadd.f32 %v1520, %v1524
  %v1529 = vmax.f32 %v1525, 0.0
  %v1530 = vmax.f32 %v1526, 0.0
  %v1531 = vmax.f32 %v1527, 0.0
  %v1532 = vmax.f32 %v1528, 0.0
  %v1533 = vadd.f32 %v1529, %v39
  %v1534 = vadd.f32 %v1530, %v40
  %v1535 = vadd.f32 %v1531, %v41
  %v1536 = vadd.f32 %v1532, %v42
  %1537 = vst [vmem:[%s11] sm:$0xff] %v1533
  %1538 = vst [vmem:[%s11 + $0x8] sm:$0xff] %v1534
  %1539 = vst [vmem:[%s11 + $0x10] sm:$0xff] %v1535
  %1540 = vst [vmem:[%s11 + $0x18] sm:$0xff] %v1536
  // Predicated region
  $region46: #{res_block_forward.1} parent=0 // pred_check
    _
  $region47: #{res_block_forward.1} parent=0 // pred_check_branch
    %1542 = sbr.rel (0) target = $region49
  $region48: #{res_block_forward.1} parent=0 // pred_region
    _
  $region49: #{res_block_forward.1} parent=0 // pred_fallthru
    _
  // Predicated region
  $region50: #{res_block_forward.1} parent=0 // pred_check
    _
  $region51: #{res_block_forward.1} parent=0 // pred_check_branch
    %1544 = sbr.rel (0) target = $region53
  $region52: #{res_block_forward.1} parent=0 // pred_region
    _
  $region53: #{res_block_forward.1} parent=0 // pred_fallthru
    _

</llo_original>
